<compile_context>
chip_gen: v7x
topology: tpu7x:2x2x1
jax: 0.10.0
libtpu: 0.0.40
codegen_flags: <defaults>
</compile_context>

<pallas_src>
import functools

import jax
import jax.numpy as jnp
from jax.experimental import pallas as pl
from jax.experimental.pallas import tpu as pltpu

SQRT_HALF = 0.7071067811865476  # 1/sqrt(2)
LANE = 128


def _round_up(x, m):
    return ((x + m - 1) // m) * m


def _cdiv(a, b):
    return -(-a // b)


def _vmem_capacity_bytes():
    """Physical VMEM per TensorCore (128 MiB v5e/v6e, 64 MiB v7x); conservative fallback."""
    try:
        cap = getattr(pltpu.get_tpu_info(), "vmem_capacity_bytes", None)
        if cap:
            return int(cap)
    except Exception:
        pass
    return 64 << 20


def _plan_tiles(B, N, E_pad, H_pad, O_pad, *, force_tm=None, force_tk=None):
    """Pick (TM, TK, k_tiles) from the generation's VMEM capacity.  Returns python ints."""
    vmem_cap = _vmem_capacity_bytes()
    budget = max(int(vmem_cap) - (12 << 20), 24 << 20)   # headroom for compiler-internal scratch

    # single-buffered f32 weight residency ((1, *) vectors pad to 8 sublanes in VMEM)
    weights = 4 * (E_pad * H_pad + H_pad * O_pad) + 4 * 8 * (4 * H_pad + O_pad)

    def need_resident(tm):
        return (weights
                + N * E_pad * 2                # resident bf16 init_emb (single buffer)
                + 2 * tm * N * 2               # double-buffered bf16 A row tiles
                + 2 * tm * O_pad * 4           # double-buffered f32 output tiles
                + tm * E_pad * 4               # f32 accumulator scratch
                + 2 * tm * H_pad * 4)          # y / yn / ge intermediates headroom

    def need_ktiled(tm, tk):
        return (weights
                + 2 * tk * E_pad * 2           # double-buffered bf16 init_emb K-blocks
                + 2 * tm * tk * 2              # double-buffered bf16 A tiles
                + 2 * tm * O_pad * 4
                + tm * E_pad * 4
                + 2 * tm * H_pad * 4)

    n8 = _round_up(N, 8)

    if force_tm is not None:                   # debug/test override
        tm = int(force_tm)
        assert tm % 8 == 0
        if force_tk is not None and int(force_tk) < N:
            tk = int(force_tk)
            k_tiles = _cdiv(N, tk)
            need = need_ktiled(tm, tk)
        else:
            tk, k_tiles = N, 1
            need = need_resident(tm)
        return tm, tk, k_tiles, need, vmem_cap

    tm_cands = sorted({min(c, n8) for c in
                       (1024, 768, 512, 384, 256, 192, 128, 96, 64, 48, 32, 24, 16, 8)
                       if min(c, n8) >= 8}, reverse=True)

    tm = tk = need = None
    k_tiles = 1
    for cand in tm_cands:                      # prefer resident contraction (no K axis)
        if need_resident(cand) <= budget:
            tm, tk, k_tiles, need = cand, N, 1, need_resident(cand)
            break
    if tm is None:                             # very large N: tile the contraction dim too
        for cand in tm_cands:
            for tkc in (8192, 4096, 2048, 1024, 512, 256, 128):
                if tkc >= N:
                    continue
                if need_ktiled(cand, tkc) <= budget:
                    tm, tk, k_tiles, need = cand, tkc, _cdiv(N, tkc), need_ktiled(cand, tkc)
                    break
            if tm is not None:
                break
    if tm is None:                             # last resort: minimal tiles
        tm, tk = 8, min(128, _round_up(N, 128))
        k_tiles = _cdiv(N, tk)
        need = need_ktiled(tm, tk)

    # v7x megacore: keep at least 2 grid shards so both TensorCores get work.
    while B * _cdiv(n8, tm) < 2 and tm > 8:
        tm = max(8, _round_up(_cdiv(tm, 2), 8))
    if k_tiles == 1:
        need = need_resident(tm)

    return tm, tk, k_tiles, need, vmem_cap


def _make_kernel(hidden_real):
    """Kernel for one (graph, row-tile, k-tile) grid point.  `hidden_real` = un-padded width."""
    inv_h = 1.0 / float(hidden_real)

    def kernel(a_ref, e0_ref, w1_ref, b1_ref, g_ref, bt_ref, m_ref, w2_ref, b2_ref,
               o_ref, acc_ref):
        k = pl.program_id(2)

        # ---- hop propagation H = A @ init_emb: bf16 MXU matmul, f32 accumulation ----
        part = jnp.dot(a_ref[...], e0_ref[...], preferred_element_type=jnp.float32)  # (TM, E_pad)

        @pl.when(k == 0)
        def _():
            acc_ref[...] = part

        @pl.when(k != 0)
        def _():
            acc_ref[...] += part

        @pl.when(k == pl.num_programs(2) - 1)
        def _():
            h = acc_ref[...]
            # net: Linear1, with the interleaved hop-stack (P) algebraically folded into W1
            y = jnp.dot(h, w1_ref[...], preferred_element_type=jnp.float32) + b1_ref[...]
            # LayerNorm over the REAL hidden width (padded lanes of y are exact zeros; m_ref is
            # a precomputed 0/1 lane mask -> no per-step iota/compare/select)
            mu = jnp.sum(y, axis=-1, keepdims=True) * inv_h
            yc = (y - mu) * m_ref[...]
            var = jnp.sum(yc * yc, axis=-1, keepdims=True) * inv_h
            yn = yc * jax.lax.rsqrt(var + 1e-5) * g_ref[...] + bt_ref[...]
            # exact GELU (nn.GELU(approximate='none')), erf goes to the EUP
            ge = 0.5 * yn * (1.0 + jax.lax.erf(yn * SQRT_HALF))
            # final Linear; lane-dense (O_pad = multiple of 128) unmasked store
            o_ref[...] = jnp.dot(ge, w2_ref[...], preferred_element_type=jnp.float32) + b2_ref[...]

    return kernel


@functools.partial(jax.jit,
                   static_argnames=("max_hop", "tm", "tk", "k_tiles", "vmem_limit", "single_buffer"))
def _forward(params, adj_batch, perturb_one_hot, *, max_hop, tm, tk, k_tiles, vmem_limit,
             single_buffer):
    emb_table = params["emb_table"]                 # (C, E)
    w1, b1 = params["w1"], params["b1"]             # (max_hop*E, H), (1, H)
    gamma, beta = params["gamma"], params["beta"]   # (1, H)
    w2, b2 = params["w2"], params["b2"]             # (H, O), (1, O)

    B, N, _ = adj_batch.shape
    E = emb_table.shape[1]
    H = w1.shape[1]
    O = w2.shape[1]

    E_pad = _round_up(E, LANE)
    H_pad = _round_up(H, LANE)
    O_pad = _round_up(O, LANE)
    N_r = _round_up(N, tm)          # padded row (output-node) dim
    N_k = k_tiles * tk              # padded contraction dim (== N when k_tiles == 1)

    # glue: embedding lookup -- init_emb = emb_p(perturb_one_hot.T.argmax(dim=1))
    idx = jnp.argmax(perturb_one_hot.T, axis=1)                                      # (N,)
    init_emb = emb_table[idx]                                                        # (N, E)

    # glue: fold the interleaved hop-stack into W1 (exact: all hops identical in the reference).
    #   omega[:, e*max_hop + hop] = H[:, e]  =>  omega @ W1 == H @ W1_eff
    w1_eff = jnp.sum(w1.astype(jnp.float32).reshape(E, max_hop, H), axis=1)          # (E, H)

    # ---- zero-pad feature dims to 128 lanes; init_emb in bf16 for the bf16 MXU path ----
    init_emb_p = jnp.zeros((N_k, E_pad), jnp.bfloat16).at[:N, :E].set(init_emb.astype(jnp.bfloat16))
    w1_p = jnp.zeros((E_pad, H_pad), jnp.float32).at[:E, :H].set(w1_eff)
    b1_p = jnp.zeros((1, H_pad), jnp.float32).at[:, :H].set(b1.astype(jnp.float32))
    g_p = jnp.zeros((1, H_pad), jnp.float32).at[:, :H].set(gamma.astype(jnp.float32))
    bt_p = jnp.zeros((1, H_pad), jnp.float32).at[:, :H].set(beta.astype(jnp.float32))
    m_p = jnp.zeros((1, H_pad), jnp.float32).at[:, :H].set(1.0)                      # LN lane mask
    w2_p = jnp.zeros((H_pad, O_pad), jnp.float32).at[:H, :O].set(w2.astype(jnp.float32))
    b2_p = jnp.zeros((1, O_pad), jnp.float32).at[:, :O].set(b2.astype(jnp.float32))

    # adjacency is consumed in bf16 (exact for integer edge multiplicities <= 256); callers that
    # use build_dense_adjacency() already supply bf16, so no cast pass runs here.
    adj = adj_batch if adj_batch.dtype == jnp.bfloat16 else adj_batch.astype(jnp.bfloat16)
    if (N_r, N_k) != (N, N):
        adj = jnp.pad(adj, ((0, 0), (0, N_r - N), (0, N_k - N)))                     # zero rows/cols

    kernel = _make_kernel(H)

    def const_spec(shape):
        if single_buffer:
            return pl.BlockSpec(shape, lambda b, i, k: (0, 0), pipeline_mode=pl.Buffered(1))
        return pl.BlockSpec(shape, lambda b, i, k: (0, 0))

    if k_tiles == 1 and single_buffer:
        e0_spec = pl.BlockSpec((tk, E_pad), lambda b, i, k: (k, 0), pipeline_mode=pl.Buffered(1))
    else:
        e0_spec = pl.BlockSpec((tk, E_pad), lambda b, i, k: (k, 0))

    grid_spec = pltpu.PrefetchScalarGridSpec(
        num_scalar_prefetch=0,
        grid=(B, N_r // tm, k_tiles),
        in_specs=[
            pl.BlockSpec((pl.Squeezed(), tm, tk), lambda b, i, k: (b, i, k)),        # A (bf16)
            e0_spec,                                                                 # init_emb
            const_spec((E_pad, H_pad)),                                              # W1_eff
            const_spec((1, H_pad)),                                                  # b1
            const_spec((1, H_pad)),                                                  # ln gamma
            const_spec((1, H_pad)),                                                  # ln beta
            const_spec((1, H_pad)),                                                  # ln lane mask
            const_spec((H_pad, O_pad)),                                              # W2
            const_spec((1, O_pad)),                                                  # b2
        ],
        out_specs=pl.BlockSpec((pl.Squeezed(), tm, O_pad), lambda b, i, k: (b, i, 0)),
        scratch_shapes=[pltpu.VMEM((tm, E_pad), jnp.float32)],                       # H accumulator
    )

    out_pad = pl.pallas_call(
        kernel,
        out_shape=jax.ShapeDtypeStruct((B, N_r, O_pad), jnp.float32),
        grid_spec=grid_spec,
        compiler_params=pltpu.CompilerParams(
            dimension_semantics=("parallel", "parallel", "arbitrary"),
            vmem_limit_bytes=vmem_limit,
        ),
    )(adj, init_emb_p, w1_p, b1_p, g_p, bt_p, m_p, w2_p, b2_p)

    return out_pad[:, :N, :O]


def perturb_embedding_forward(params, adj_batch, perturb_one_hot, *, max_hop,
                              _force_tm=None, _force_tk=None):
    """adj_batch: (B, N, N) dense adjacencies (ideally bf16); perturb_one_hot: (C, N_genes)."""
    B, N, _ = adj_batch.shape
    E = params["emb_table"].shape[1]
    H = params["w1"].shape[1]
    O = params["w2"].shape[1]
    E_pad, H_pad, O_pad = _round_up(E, LANE), _round_up(H, LANE), _round_up(O, LANE)

    tm, tk, k_tiles, need, vmem_cap = _plan_tiles(B, N, E_pad, H_pad, O_pad,
                                                  force_tm=_force_tm, force_tk=_force_tk)
    # generous ceiling (covers the double-buffered-weights fallback), clamped to physical VMEM
    vmem_limit = int(min(vmem_cap, max(2 * need + (8 << 20), 32 << 20)))

    kwargs = dict(max_hop=max_hop, tm=tm, tk=tk, k_tiles=k_tiles, vmem_limit=vmem_limit)
    try:
        return _forward(params, adj_batch, perturb_one_hot, single_buffer=True, **kwargs)
    except Exception:
        # pl.Buffered(1) unsupported on this jax version -> fall back to default double-buffering.
        return _forward(params, adj_batch, perturb_one_hot, single_buffer=False, **kwargs)


def build_dense_adjacency(edge_index, num_nodes, dtype=jnp.bfloat16):
    """Dense equivalent of torch.sparse_coo_tensor(edge_index, ones).coalesce().

    Built/stored directly in bf16 so the kernel's dominant HBM stream needs no cast pass.
    Integer edge multiplicities <= 256 are exact in bf16.
    """
    rows, cols = edge_index[0], edge_index[1]
    a = jnp.zeros((num_nodes, num_nodes), jnp.float32).at[rows, cols].add(1.0)  # duplicates sum
    return a.astype(dtype)


def _reference(params, adj, perturb_one_hot, max_hop, emb_dtype):
    """Pure-JAX reference of the module (un-fused, un-padded); emb_dtype quantizes the embedding."""
    B, N, _ = adj.shape
    E = params["emb_table"].shape[1]
    idx = jnp.argmax(perturb_one_hot.T, axis=1)
    init_emb = params["emb_table"][idx].astype(emb_dtype).astype(jnp.float32)
    a = adj.astype(jnp.float32)
    h = jnp.einsum("bij,jk->bik", a, init_emb)
    omega = jnp.stack([h] * max_hop, axis=-1).reshape(B, N, max_hop * E)
    y = omega @ params["w1"] + params["b1"]
    mu = y.mean(-1, keepdims=True)
    var = ((y - mu) ** 2).mean(-1, keepdims=True)
    yn = (y - mu) / jnp.sqrt(var + 1e-5) * params["gamma"] + params["beta"]
    ge = 0.5 * yn * (1.0 + jax.lax.erf(yn * SQRT_HALF))
    return ge @ params["w2"] + params["b2"]


if __name__ == "__main__":
    key = jax.random.PRNGKey(0)
    keys = jax.random.split(key, 12)

    # small, module-consistent shapes
    B = 2            # number of graphs
    C = 5            # number of cells (perturb_one_hot.shape[0])
    max_hop = 3
    embed_dim = 8
    hidden_dim = 32
    output_dim = 16
    D_in = max_hop * embed_dim

    # deterministic parameter init (synthetic; shapes from __init__)
    params = {
        "emb_table": jax.random.normal(keys[0], (C, embed_dim), jnp.float32),          # nn.Embedding
        "w1": jax.random.normal(keys[1], (D_in, hidden_dim), jnp.float32) * 0.1,        # Linear1
        "b1": jax.random.normal(keys[2], (1, hidden_dim), jnp.float32) * 0.01,
        "gamma": jnp.ones((1, hidden_dim), jnp.float32),                                 # LayerNorm
        "beta": jnp.zeros((1, hidden_dim), jnp.float32),
        "w2": jax.random.normal(keys[3], (hidden_dim, output_dim), jnp.float32) * 0.1,   # Linear2
        "b2": jax.random.normal(keys[4], (1, output_dim), jnp.float32) * 0.01,
    }

    # ---- test 1: small graphs (resident-contraction path, k_tiles == 1) ----
    N1, edges1 = 16, 24
    perturb1 = jax.random.uniform(keys[5], (C, N1), jnp.float32)
    adj1 = jnp.stack([
        build_dense_adjacency(jax.random.randint(keys[6], (2, edges1), 0, N1, dtype=jnp.int32), N1),
        build_dense_adjacency(jax.random.randint(keys[7], (2, edges1), 0, N1, dtype=jnp.int32), N1),
    ], axis=0)

    out1 = jax.block_until_ready(perturb_embedding_forward(params, adj1, perturb1, max_hop=max_hop))
    assert out1.shape == (B, N1, output_dim), out1.shape
    assert bool(jnp.all(jnp.isfinite(out1)))

    ref1_q = _reference(params, adj1, perturb1, max_hop, jnp.bfloat16)  # same bf16-rounded embedding
    ref1_f = _reference(params, adj1, perturb1, max_hop, jnp.float32)   # full-f32 module
    err_q = float(jnp.max(jnp.abs(out1 - ref1_q)))
    err_f = float(jnp.max(jnp.abs(out1 - ref1_f)))
    assert err_q < 5e-3, f"kernel vs bf16-embedding reference: {err_q}"
    assert err_f < 1e-1, f"kernel vs f32 reference (documents bf16 embedding approx): {err_f}"

    # ---- test 2: force the K-tiled contraction path (k_tiles > 1) on a larger graph ----
    N2, edges2 = 256, 512
    perturb2 = jax.random.uniform(keys[8], (C, N2), jnp.float32)
    adj2 = jnp.stack([
        build_dense_adjacency(jax.random.randint(keys[9], (2, edges2), 0, N2, dtype=jnp.int32), N2),
        build_dense_adjacency(jax.random.randint(keys[10], (2, edges2), 0, N2, dtype=jnp.int32), N2),
    ], axis=0)

    out2 = jax.block_until_ready(
        perturb_embedding_forward(params, adj2, perturb2, max_hop=max_hop,
                                  _force_tm=64, _force_tk=128))
    assert out2.shape == (B, N2, output_dim), out2.shape
    ref2_q = _reference(params, adj2, perturb2, max_hop, jnp.bfloat16)
    err2 = float(jnp.max(jnp.abs(out2 - ref2_q)))
    assert err2 < 5e-3, f"K-tiled kernel vs bf16-embedding reference: {err2}"

    print("KERNEL_OK")
</pallas_src>

<mosaic_0001>
module attributes {stable_mosaic.version = 11 : i64} {
  func.func @kernel(%arg0: i32, %arg1: i32, %arg2: i32, %arg3: memref<1x16x16xbf16, #tpu.memory_space<vmem>>, %arg4: memref<16x128xbf16, #tpu.memory_space<vmem>>, %arg5: memref<128x128xf32, #tpu.memory_space<vmem>>, %arg6: memref<1x128xf32, #tpu.memory_space<vmem>>, %arg7: memref<1x128xf32, #tpu.memory_space<vmem>>, %arg8: memref<1x128xf32, #tpu.memory_space<vmem>>, %arg9: memref<1x128xf32, #tpu.memory_space<vmem>>, %arg10: memref<128x128xf32, #tpu.memory_space<vmem>>, %arg11: memref<1x128xf32, #tpu.memory_space<vmem>>, %arg12: memref<1x16x128xf32, #tpu.memory_space<vmem>>, %arg13: memref<16x128xf32, #tpu.memory_space<vmem>>) attributes {dimension_semantics = [#tpu.dimension_semantics<parallel>, #tpu.dimension_semantics<parallel>, #tpu.dimension_semantics<arbitrary>], iteration_bounds = array<i64: 2, 1, 1>, scalar_prefetch = 0 : i64, scratch_operands = 1 : i64, tpu.core_type = #tpu.core_type<tc>, window_params = [{transform_indices = @transform_0, window_bounds = array<i64: 1, 16, 16>}, {pipeline_mode = #tpu.pipeline_mode<synchronous>, transform_indices = @transform_1, window_bounds = array<i64: 16, 128>}, {pipeline_mode = #tpu.pipeline_mode<synchronous>, transform_indices = @transform_2, window_bounds = array<i64: 128, 128>}, {pipeline_mode = #tpu.pipeline_mode<synchronous>, transform_indices = @transform_3, window_bounds = array<i64: 1, 128>}, {pipeline_mode = #tpu.pipeline_mode<synchronous>, transform_indices = @transform_4, window_bounds = array<i64: 1, 128>}, {pipeline_mode = #tpu.pipeline_mode<synchronous>, transform_indices = @transform_5, window_bounds = array<i64: 1, 128>}, {pipeline_mode = #tpu.pipeline_mode<synchronous>, transform_indices = @transform_6, window_bounds = array<i64: 1, 128>}, {pipeline_mode = #tpu.pipeline_mode<synchronous>, transform_indices = @transform_7, window_bounds = array<i64: 128, 128>}, {pipeline_mode = #tpu.pipeline_mode<synchronous>, transform_indices = @transform_8, window_bounds = array<i64: 1, 128>}, {transform_indices = @transform_9, window_bounds = array<i64: 1, 16, 128>}]} {
    %c0 = arith.constant 0 : index
    %c0_0 = arith.constant 0 : index
    %c0_1 = arith.constant 0 : index
    %0 = vector.load %arg3[%c0, %c0_0, %c0_1] : memref<1x16x16xbf16, #tpu.memory_space<vmem>>, vector<1x16x16xbf16>
    %1 = vector.shape_cast %0 : vector<1x16x16xbf16> to vector<16x16xbf16>
    %c0_2 = arith.constant 0 : index
    %c0_3 = arith.constant 0 : index
    %2 = vector.load %arg4[%c0_2, %c0_3] : memref<16x128xbf16, #tpu.memory_space<vmem>>, vector<16x128xbf16>
    %cst = arith.constant dense<0.000000e+00> : vector<16x128xf32>
    %3 = tpu.matmul %1, %2, %cst {dimension_numbers = #tpu.dot_dimension_numbers<[1], [0], [0], [1], [0, 0, 1, 1], [], []>} : vector<16x16xbf16>, vector<16x128xbf16>, vector<16x128xf32> -> vector<16x128xf32>
    %c0_i32 = arith.constant 0 : i32
    %4 = arith.cmpi eq, %arg2, %c0_i32 : i32
    %5 = arith.extui %4 : i1 to i32
    %c0_i32_4 = arith.constant 0 : i32
    %6 = arith.cmpi ne, %5, %c0_i32_4 : i32
    scf.if %6 {
      %c0_9 = arith.constant 0 : index
      %c0_10 = arith.constant 0 : index
      %13 = vector.load %arg13[%c0_9, %c0_10] : memref<16x128xf32, #tpu.memory_space<vmem>>, vector<16x128xf32>
      tpu.vector_store %arg13[%c0_9, %c0_10], %3 {strides = array<i32>} : memref<16x128xf32, #tpu.memory_space<vmem>>, vector<16x128xf32>,
    } else {
    }
    %c0_i32_5 = arith.constant 0 : i32
    %7 = arith.cmpi ne, %arg2, %c0_i32_5 : i32
    %8 = arith.extui %7 : i1 to i32
    %c0_i32_6 = arith.constant 0 : i32
    %9 = arith.cmpi ne, %8, %c0_i32_6 : i32
    scf.if %9 {
      %c0_9 = arith.constant 0 : index
      %c0_10 = arith.constant 0 : index
      %13 = vector.load %arg13[%c0_9, %c0_10] : memref<16x128xf32, #tpu.memory_space<vmem>>, vector<16x128xf32>
      %14 = arith.addf %13, %3 : vector<16x128xf32>
      %c0_11 = arith.constant 0 : index
      %c0_12 = arith.constant 0 : index
      %15 = vector.load %arg13[%c0_11, %c0_12] : memref<16x128xf32, #tpu.memory_space<vmem>>, vector<16x128xf32>
      tpu.vector_store %arg13[%c0_11, %c0_12], %14 {strides = array<i32>} : memref<16x128xf32, #tpu.memory_space<vmem>>, vector<16x128xf32>,
    } else {
    }
    %c0_i32_7 = arith.constant 0 : i32
    %10 = arith.cmpi eq, %arg2, %c0_i32_7 : i32
    %11 = arith.extui %10 : i1 to i32
    %c0_i32_8 = arith.constant 0 : i32
    %12 = arith.cmpi ne, %11, %c0_i32_8 : i32
    scf.if %12 {
      %c0_9 = arith.constant 0 : index
      %c0_10 = arith.constant 0 : index
      %13 = vector.load %arg13[%c0_9, %c0_10] : memref<16x128xf32, #tpu.memory_space<vmem>>, vector<16x128xf32>
      %c0_11 = arith.constant 0 : index
      %c0_12 = arith.constant 0 : index
      %14 = vector.load %arg5[%c0_11, %c0_12] : memref<128x128xf32, #tpu.memory_space<vmem>>, vector<128x128xf32>
      %cst_13 = arith.constant dense<0.000000e+00> : vector<16x128xf32>
      %15 = tpu.matmul %13, %14, %cst_13 {dimension_numbers = #tpu.dot_dimension_numbers<[1], [0], [0], [1], [0, 0, 1, 1], [], []>} : vector<16x128xf32>, vector<128x128xf32>, vector<16x128xf32> -> vector<16x128xf32>
      %c0_14 = arith.constant 0 : index
      %c0_15 = arith.constant 0 : index
      %16 = vector.load %arg6[%c0_14, %c0_15] : memref<1x128xf32, #tpu.memory_space<vmem>>, vector<1x128xf32>
      %17 = vector.broadcast %16 : vector<1x128xf32> to vector<16x128xf32>
      %18 = arith.addf %15, %17 : vector<16x128xf32>
      %cst_16 = arith.constant dense<0.000000e+00> : vector<16xf32>
      %19 = vector.multi_reduction <add>, %18, %cst_16 [1] : vector<16x128xf32> to vector<16xf32>
      %20 = vector.shape_cast %19 : vector<16xf32> to vector<16x1xf32>
      %cst_17 = arith.constant 3.125000e-02 : f32
      %21 = vector.broadcast %cst_17 : f32 to vector<16x1xf32>
      %22 = arith.mulf %20, %21 : vector<16x1xf32>
      %23 = vector.broadcast %22 : vector<16x1xf32> to vector<16x128xf32>
      %24 = arith.subf %18, %23 : vector<16x128xf32>
      %c0_18 = arith.constant 0 : index
      %c0_19 = arith.constant 0 : index
      %25 = vector.load %arg9[%c0_18, %c0_19] : memref<1x128xf32, #tpu.memory_space<vmem>>, vector<1x128xf32>
      %26 = vector.broadcast %25 : vector<1x128xf32> to vector<16x128xf32>
      %27 = arith.mulf %24, %26 : vector<16x128xf32>
      %28 = arith.mulf %27, %27 : vector<16x128xf32>
      %cst_20 = arith.constant dense<0.000000e+00> : vector<16xf32>
      %29 = vector.multi_reduction <add>, %28, %cst_20 [1] : vector<16x128xf32> to vector<16xf32>
      %30 = vector.shape_cast %29 : vector<16xf32> to vector<16x1xf32>
      %cst_21 = arith.constant 3.125000e-02 : f32
      %31 = vector.broadcast %cst_21 : f32 to vector<16x1xf32>
      %32 = arith.mulf %30, %31 : vector<16x1xf32>
      %cst_22 = arith.constant 9.99999974E-6 : f32
      %33 = vector.broadcast %cst_22 : f32 to vector<16x1xf32>
      %34 = arith.addf %32, %33 : vector<16x1xf32>
      %35 = math.rsqrt %34 : vector<16x1xf32>
      %36 = vector.broadcast %35 : vector<16x1xf32> to vector<16x128xf32>
      %37 = arith.mulf %27, %36 : vector<16x128xf32>
      %c0_23 = arith.constant 0 : index
      %c0_24 = arith.constant 0 : index
      %38 = vector.load %arg7[%c0_23, %c0_24] : memref<1x128xf32, #tpu.memory_space<vmem>>, vector<1x128xf32>
      %39 = vector.broadcast %38 : vector<1x128xf32> to vector<16x128xf32>
      %40 = arith.mulf %37, %39 : vector<16x128xf32>
      %c0_25 = arith.constant 0 : index
      %c0_26 = arith.constant 0 : index
      %41 = vector.load %arg8[%c0_25, %c0_26] : memref<1x128xf32, #tpu.memory_space<vmem>>, vector<1x128xf32>
      %42 = vector.broadcast %41 : vector<1x128xf32> to vector<16x128xf32>
      %43 = arith.addf %40, %42 : vector<16x128xf32>
      %cst_27 = arith.constant 5.000000e-01 : f32
      %44 = vector.broadcast %cst_27 : f32 to vector<16x128xf32>
      %45 = arith.mulf %44, %43 : vector<16x128xf32>
      %cst_28 = arith.constant 0.707106769 : f32
      %46 = vector.broadcast %cst_28 : f32 to vector<16x128xf32>
      %47 = arith.mulf %43, %46 : vector<16x128xf32>
      %48 = math.erf %47 : vector<16x128xf32>
      %cst_29 = arith.constant 1.000000e+00 : f32
      %49 = vector.broadcast %cst_29 : f32 to vector<16x128xf32>
      %50 = arith.addf %49, %48 : vector<16x128xf32>
      %51 = arith.mulf %45, %50 : vector<16x128xf32>
      %c0_30 = arith.constant 0 : index
      %c0_31 = arith.constant 0 : index
      %52 = vector.load %arg10[%c0_30, %c0_31] : memref<128x128xf32, #tpu.memory_space<vmem>>, vector<128x128xf32>
      %cst_32 = arith.constant dense<0.000000e+00> : vector<16x128xf32>
      %53 = tpu.matmul %51, %52, %cst_32 {dimension_numbers = #tpu.dot_dimension_numbers<[1], [0], [0], [1], [0, 0, 1, 1], [], []>} : vector<16x128xf32>, vector<128x128xf32>, vector<16x128xf32> -> vector<16x128xf32>
      %c0_33 = arith.constant 0 : index
      %c0_34 = arith.constant 0 : index
      %54 = vector.load %arg11[%c0_33, %c0_34] : memref<1x128xf32, #tpu.memory_space<vmem>>, vector<1x128xf32>
      %55 = vector.broadcast %54 : vector<1x128xf32> to vector<16x128xf32>
      %56 = arith.addf %53, %55 : vector<16x128xf32>
      %c0_35 = arith.constant 0 : index
      %c0_36 = arith.constant 0 : index
      %c0_37 = arith.constant 0 : index
      %57 = vector.load %arg12[%c0_35, %c0_36, %c0_37] : memref<1x16x128xf32, #tpu.memory_space<vmem>>, vector<1x16x128xf32>
      %58 = vector.shape_cast %57 : vector<1x16x128xf32> to vector<16x128xf32>
      %59 = vector.shape_cast %56 : vector<16x128xf32> to vector<1x16x128xf32>
      tpu.vector_store %arg12[%c0_35, %c0_36, %c0_37], %59 {strides = array<i32>} : memref<1x16x128xf32, #tpu.memory_space<vmem>>, vector<1x16x128xf32>,
    } else {
    }
    return
  }
  func.func @transform_0(%arg0: i32, %arg1: i32, %arg2: i32) -> (i32, i32, i32) {
    %c0_i32 = arith.constant 0 : i32
    return %arg0, %arg1, %arg2 : i32, i32, i32
  }
  func.func @transform_1(%arg0: i32, %arg1: i32, %arg2: i32) -> (i32, i32) {
    %c0_i32 = arith.constant 0 : i32
    %c0_i32_0 = arith.constant 0 : i32
    return %arg2, %c0_i32 : i32, i32
  }
  func.func @transform_2(%arg0: i32, %arg1: i32, %arg2: i32) -> (i32, i32) {
    %c0_i32 = arith.constant 0 : i32
    %c0_i32_0 = arith.constant 0 : i32
    %c0_i32_1 = arith.constant 0 : i32
    return %c0_i32, %c0_i32_0 : i32, i32
  }
  func.func @transform_3(%arg0: i32, %arg1: i32, %arg2: i32) -> (i32, i32) {
    %c0_i32 = arith.constant 0 : i32
    %c0_i32_0 = arith.constant 0 : i32
    %c0_i32_1 = arith.constant 0 : i32
    return %c0_i32, %c0_i32_0 : i32, i32
  }
  func.func @transform_4(%arg0: i32, %arg1: i32, %arg2: i32) -> (i32, i32) {
    %c0_i32 = arith.constant 0 : i32
    %c0_i32_0 = arith.constant 0 : i32
    %c0_i32_1 = arith.constant 0 : i32
    return %c0_i32, %c0_i32_0 : i32, i32
  }
  func.func @transform_5(%arg0: i32, %arg1: i32, %arg2: i32) -> (i32, i32) {
    %c0_i32 = arith.constant 0 : i32
    %c0_i32_0 = arith.constant 0 : i32
    %c0_i32_1 = arith.constant 0 : i32
    return %c0_i32, %c0_i32_0 : i32, i32
  }
  func.func @transform_6(%arg0: i32, %arg1: i32, %arg2: i32) -> (i32, i32) {
    %c0_i32 = arith.constant 0 : i32
    %c0_i32_0 = arith.constant 0 : i32
    %c0_i32_1 = arith.constant 0 : i32
    return %c0_i32, %c0_i32_0 : i32, i32
  }
  func.func @transform_7(%arg0: i32, %arg1: i32, %arg2: i32) -> (i32, i32) {
    %c0_i32 = arith.constant 0 : i32
    %c0_i32_0 = arith.constant 0 : i32
    %c0_i32_1 = arith.constant 0 : i32
    return %c0_i32, %c0_i32_0 : i32, i32
  }
  func.func @transform_8(%arg0: i32, %arg1: i32, %arg2: i32) -> (i32, i32) {
    %c0_i32 = arith.constant 0 : i32
    %c0_i32_0 = arith.constant 0 : i32
    %c0_i32_1 = arith.constant 0 : i32
    return %c0_i32, %c0_i32_0 : i32, i32
  }
  func.func @transform_9(%arg0: i32, %arg1: i32, %arg2: i32) -> (i32, i32, i32) {
    %c0_i32 = arith.constant 0 : i32
    %c0_i32_0 = arith.constant 0 : i32
    return %arg0, %arg1, %c0_i32 : i32, i32, i32
  }
}

module attributes {stable_mosaic.version = 11 : i64} {
  func.func @kernel(%arg0: i32, %arg1: i32, %arg2: i32, %arg3: memref<1x16x16xbf16, #tpu.memory_space<vmem>>, %arg4: memref<16x128xbf16, #tpu.memory_space<vmem>>, %arg5: memref<128x128xf32, #tpu.memory_space<vmem>>, %arg6: memref<1x128xf32, #tpu.memory_space<vmem>>, %arg7: memref<1x128xf32, #tpu.memory_space<vmem>>, %arg8: memref<1x128xf32, #tpu.memory_space<vmem>>, %arg9: memref<1x128xf32, #tpu.memory_space<vmem>>, %arg10: memref<128x128xf32, #tpu.memory_space<vmem>>, %arg11: memref<1x128xf32, #tpu.memory_space<vmem>>, %arg12: memref<1x16x128xf32, #tpu.memory_space<vmem>>, %arg13: memref<16x128xf32, #tpu.memory_space<vmem>>) attributes {dimension_semantics = [#tpu.dimension_semantics<parallel>, #tpu.dimension_semantics<parallel>, #tpu.dimension_semantics<arbitrary>], iteration_bounds = array<i64: 2, 1, 1>, scalar_prefetch = 0 : i64, scratch_operands = 1 : i64, tpu.core_type = #tpu.core_type<tc>, window_params = [{transform_indices = @transform_0, window_bounds = array<i64: 1, 16, 16>}, {transform_indices = @transform_1, window_bounds = array<i64: 16, 128>}, {pipeline_mode = #tpu.pipeline_mode<synchronous>, transform_indices = @transform_2, window_bounds = array<i64: 128, 128>}, {pipeline_mode = #tpu.pipeline_mode<synchronous>, transform_indices = @transform_3, window_bounds = array<i64: 1, 128>}, {pipeline_mode = #tpu.pipeline_mode<synchronous>, transform_indices = @transform_4, window_bounds = array<i64: 1, 128>}, {pipeline_mode = #tpu.pipeline_mode<synchronous>, transform_indices = @transform_5, window_bounds = array<i64: 1, 128>}, {pipeline_mode = #tpu.pipeline_mode<synchronous>, transform_indices = @transform_6, window_bounds = array<i64: 1, 128>}, {pipeline_mode = #tpu.pipeline_mode<synchronous>, transform_indices = @transform_7, window_bounds = array<i64: 128, 128>}, {pipeline_mode = #tpu.pipeline_mode<synchronous>, transform_indices = @transform_8, window_bounds = array<i64: 1, 128>}, {transform_indices = @transform_9, window_bounds = array<i64: 1, 16, 128>}]} {
    %c0 = arith.constant 0 : index
    %c0_0 = arith.constant 0 : index
    %c0_1 = arith.constant 0 : index
    %0 = vector.load %arg3[%c0, %c0_0, %c0_1] : memref<1x16x16xbf16, #tpu.memory_space<vmem>>, vector<1x16x16xbf16>
    %1 = vector.shape_cast %0 : vector<1x16x16xbf16> to vector<16x16xbf16>
    %c0_2 = arith.constant 0 : index
    %c0_3 = arith.constant 0 : index
    %2 = vector.load %arg4[%c0_2, %c0_3] : memref<16x128xbf16, #tpu.memory_space<vmem>>, vector<16x128xbf16>
    %cst = arith.constant dense<0.000000e+00> : vector<16x128xf32>
    %3 = tpu.matmul %1, %2, %cst {dimension_numbers = #tpu.dot_dimension_numbers<[1], [0], [0], [1], [0, 0, 1, 1], [], []>} : vector<16x16xbf16>, vector<16x128xbf16>, vector<16x128xf32> -> vector<16x128xf32>
    %c0_i32 = arith.constant 0 : i32
    %4 = arith.cmpi eq, %arg2, %c0_i32 : i32
    %5 = arith.extui %4 : i1 to i32
    %c0_i32_4 = arith.constant 0 : i32
    %6 = arith.cmpi ne, %5, %c0_i32_4 : i32
    scf.if %6 {
      %c0_9 = arith.constant 0 : index
      %c0_10 = arith.constant 0 : index
      %13 = vector.load %arg13[%c0_9, %c0_10] : memref<16x128xf32, #tpu.memory_space<vmem>>, vector<16x128xf32>
      tpu.vector_store %arg13[%c0_9, %c0_10], %3 {strides = array<i32>} : memref<16x128xf32, #tpu.memory_space<vmem>>, vector<16x128xf32>,
    } else {
    }
    %c0_i32_5 = arith.constant 0 : i32
    %7 = arith.cmpi ne, %arg2, %c0_i32_5 : i32
    %8 = arith.extui %7 : i1 to i32
    %c0_i32_6 = arith.constant 0 : i32
    %9 = arith.cmpi ne, %8, %c0_i32_6 : i32
    scf.if %9 {
      %c0_9 = arith.constant 0 : index
      %c0_10 = arith.constant 0 : index
      %13 = vector.load %arg13[%c0_9, %c0_10] : memref<16x128xf32, #tpu.memory_space<vmem>>, vector<16x128xf32>
      %14 = arith.addf %13, %3 : vector<16x128xf32>
      %c0_11 = arith.constant 0 : index
      %c0_12 = arith.constant 0 : index
      %15 = vector.load %arg13[%c0_11, %c0_12] : memref<16x128xf32, #tpu.memory_space<vmem>>, vector<16x128xf32>
      tpu.vector_store %arg13[%c0_11, %c0_12], %14 {strides = array<i32>} : memref<16x128xf32, #tpu.memory_space<vmem>>, vector<16x128xf32>,
    } else {
    }
    %c0_i32_7 = arith.constant 0 : i32
    %10 = arith.cmpi eq, %arg2, %c0_i32_7 : i32
    %11 = arith.extui %10 : i1 to i32
    %c0_i32_8 = arith.constant 0 : i32
    %12 = arith.cmpi ne, %11, %c0_i32_8 : i32
    scf.if %12 {
      %c0_9 = arith.constant 0 : index
      %c0_10 = arith.constant 0 : index
      %13 = vector.load %arg13[%c0_9, %c0_10] : memref<16x128xf32, #tpu.memory_space<vmem>>, vector<16x128xf32>
      %c0_11 = arith.constant 0 : index
      %c0_12 = arith.constant 0 : index
      %14 = vector.load %arg5[%c0_11, %c0_12] : memref<128x128xf32, #tpu.memory_space<vmem>>, vector<128x128xf32>
      %cst_13 = arith.constant dense<0.000000e+00> : vector<16x128xf32>
      %15 = tpu.matmul %13, %14, %cst_13 {dimension_numbers = #tpu.dot_dimension_numbers<[1], [0], [0], [1], [0, 0, 1, 1], [], []>} : vector<16x128xf32>, vector<128x128xf32>, vector<16x128xf32> -> vector<16x128xf32>
      %c0_14 = arith.constant 0 : index
      %c0_15 = arith.constant 0 : index
      %16 = vector.load %arg6[%c0_14, %c0_15] : memref<1x128xf32, #tpu.memory_space<vmem>>, vector<1x128xf32>
      %17 = vector.broadcast %16 : vector<1x128xf32> to vector<16x128xf32>
      %18 = arith.addf %15, %17 : vector<16x128xf32>
      %cst_16 = arith.constant dense<0.000000e+00> : vector<16xf32>
      %19 = vector.multi_reduction <add>, %18, %cst_16 [1] : vector<16x128xf32> to vector<16xf32>
      %20 = vector.shape_cast %19 : vector<16xf32> to vector<16x1xf32>
      %cst_17 = arith.constant 3.125000e-02 : f32
      %21 = vector.broadcast %cst_17 : f32 to vector<16x1xf32>
      %22 = arith.mulf %20, %21 : vector<16x1xf32>
      %23 = vector.broadcast %22 : vector<16x1xf32> to vector<16x128xf32>
      %24 = arith.subf %18, %23 : vector<16x128xf32>
      %c0_18 = arith.constant 0 : index
      %c0_19 = arith.constant 0 : index
      %25 = vector.load %arg9[%c0_18, %c0_19] : memref<1x128xf32, #tpu.memory_space<vmem>>, vector<1x128xf32>
      %26 = vector.broadcast %25 : vector<1x128xf32> to vector<16x128xf32>
      %27 = arith.mulf %24, %26 : vector<16x128xf32>
      %28 = arith.mulf %27, %27 : vector<16x128xf32>
      %cst_20 = arith.constant dense<0.000000e+00> : vector<16xf32>
      %29 = vector.multi_reduction <add>, %28, %cst_20 [1] : vector<16x128xf32> to vector<16xf32>
      %30 = vector.shape_cast %29 : vector<16xf32> to vector<16x1xf32>
      %cst_21 = arith.constant 3.125000e-02 : f32
      %31 = vector.broadcast %cst_21 : f32 to vector<16x1xf32>
      %32 = arith.mulf %30, %31 : vector<16x1xf32>
      %cst_22 = arith.constant 9.99999974E-6 : f32
      %33 = vector.broadcast %cst_22 : f32 to vector<16x1xf32>
      %34 = arith.addf %32, %33 : vector<16x1xf32>
      %35 = math.rsqrt %34 : vector<16x1xf32>
      %36 = vector.broadcast %35 : vector<16x1xf32> to vector<16x128xf32>
      %37 = arith.mulf %27, %36 : vector<16x128xf32>
      %c0_23 = arith.constant 0 : index
      %c0_24 = arith.constant 0 : index
      %38 = vector.load %arg7[%c0_23, %c0_24] : memref<1x128xf32, #tpu.memory_space<vmem>>, vector<1x128xf32>
      %39 = vector.broadcast %38 : vector<1x128xf32> to vector<16x128xf32>
      %40 = arith.mulf %37, %39 : vector<16x128xf32>
      %c0_25 = arith.constant 0 : index
      %c0_26 = arith.constant 0 : index
      %41 = vector.load %arg8[%c0_25, %c0_26] : memref<1x128xf32, #tpu.memory_space<vmem>>, vector<1x128xf32>
      %42 = vector.broadcast %41 : vector<1x128xf32> to vector<16x128xf32>
      %43 = arith.addf %40, %42 : vector<16x128xf32>
      %cst_27 = arith.constant 5.000000e-01 : f32
      %44 = vector.broadcast %cst_27 : f32 to vector<16x128xf32>
      %45 = arith.mulf %44, %43 : vector<16x128xf32>
      %cst_28 = arith.constant 0.707106769 : f32
      %46 = vector.broadcast %cst_28 : f32 to vector<16x128xf32>
      %47 = arith.mulf %43, %46 : vector<16x128xf32>
      %48 = math.erf %47 : vector<16x128xf32>
      %cst_29 = arith.constant 1.000000e+00 : f32
      %49 = vector.broadcast %cst_29 : f32 to vector<16x128xf32>
      %50 = arith.addf %49, %48 : vector<16x128xf32>
      %51 = arith.mulf %45, %50 : vector<16x128xf32>
      %c0_30 = arith.constant 0 : index
      %c0_31 = arith.constant 0 : index
      %52 = vector.load %arg10[%c0_30, %c0_31] : memref<128x128xf32, #tpu.memory_space<vmem>>, vector<128x128xf32>
      %cst_32 = arith.constant dense<0.000000e+00> : vector<16x128xf32>
      %53 = tpu.matmul %51, %52, %cst_32 {dimension_numbers = #tpu.dot_dimension_numbers<[1], [0], [0], [1], [0, 0, 1, 1], [], []>} : vector<16x128xf32>, vector<128x128xf32>, vector<16x128xf32> -> vector<16x128xf32>
      %c0_33 = arith.constant 0 : index
      %c0_34 = arith.constant 0 : index
      %54 = vector.load %arg11[%c0_33, %c0_34] : memref<1x128xf32, #tpu.memory_space<vmem>>, vector<1x128xf32>
      %55 = vector.broadcast %54 : vector<1x128xf32> to vector<16x128xf32>
      %56 = arith.addf %53, %55 : vector<16x128xf32>
      %c0_35 = arith.constant 0 : index
      %c0_36 = arith.constant 0 : index
      %c0_37 = arith.constant 0 : index
      %57 = vector.load %arg12[%c0_35, %c0_36, %c0_37] : memref<1x16x128xf32, #tpu.memory_space<vmem>>, vector<1x16x128xf32>
      %58 = vector.shape_cast %57 : vector<1x16x128xf32> to vector<16x128xf32>
      %59 = vector.shape_cast %56 : vector<16x128xf32> to vector<1x16x128xf32>
      tpu.vector_store %arg12[%c0_35, %c0_36, %c0_37], %59 {strides = array<i32>} : memref<1x16x128xf32, #tpu.memory_space<vmem>>, vector<1x16x128xf32>,
    } else {
    }
    return
  }
  func.func @transform_0(%arg0: i32, %arg1: i32, %arg2: i32) -> (i32, i32, i32) {
    %c0_i32 = arith.constant 0 : i32
    return %arg0, %arg1, %arg2 : i32, i32, i32
  }
  func.func @transform_1(%arg0: i32, %arg1: i32, %arg2: i32) -> (i32, i32) {
    %c0_i32 = arith.constant 0 : i32
    %c0_i32_0 = arith.constant 0 : i32
    return %arg2, %c0_i32 : i32, i32
  }
  func.func @transform_2(%arg0: i32, %arg1: i32, %arg2: i32) -> (i32, i32) {
    %c0_i32 = arith.constant 0 : i32
    %c0_i32_0 = arith.constant 0 : i32
    %c0_i32_1 = arith.constant 0 : i32
    return %c0_i32, %c0_i32_0 : i32, i32
  }
  func.func @transform_3(%arg0: i32, %arg1: i32, %arg2: i32) -> (i32, i32) {
    %c0_i32 = arith.constant 0 : i32
    %c0_i32_0 = arith.constant 0 : i32
    %c0_i32_1 = arith.constant 0 : i32
    return %c0_i32, %c0_i32_0 : i32, i32
  }
  func.func @transform_4(%arg0: i32, %arg1: i32, %arg2: i32) -> (i32, i32) {
    %c0_i32 = arith.constant 0 : i32
    %c0_i32_0 = arith.constant 0 : i32
    %c0_i32_1 = arith.constant 0 : i32
    return %c0_i32, %c0_i32_0 : i32, i32
  }
  func.func @transform_5(%arg0: i32, %arg1: i32, %arg2: i32) -> (i32, i32) {
    %c0_i32 = arith.constant 0 : i32
    %c0_i32_0 = arith.constant 0 : i32
    %c0_i32_1 = arith.constant 0 : i32
    return %c0_i32, %c0_i32_0 : i32, i32
  }
  func.func @transform_6(%arg0: i32, %arg1: i32, %arg2: i32) -> (i32, i32) {
    %c0_i32 = arith.constant 0 : i32
    %c0_i32_0 = arith.constant 0 : i32
    %c0_i32_1 = arith.constant 0 : i32
    return %c0_i32, %c0_i32_0 : i32, i32
  }
  func.func @transform_7(%arg0: i32, %arg1: i32, %arg2: i32) -> (i32, i32) {
    %c0_i32 = arith.constant 0 : i32
    %c0_i32_0 = arith.constant 0 : i32
    %c0_i32_1 = arith.constant 0 : i32
    return %c0_i32, %c0_i32_0 : i32, i32
  }
  func.func @transform_8(%arg0: i32, %arg1: i32, %arg2: i32) -> (i32, i32) {
    %c0_i32 = arith.constant 0 : i32
    %c0_i32_0 = arith.constant 0 : i32
    %c0_i32_1 = arith.constant 0 : i32
    return %c0_i32, %c0_i32_0 : i32, i32
  }
  func.func @transform_9(%arg0: i32, %arg1: i32, %arg2: i32) -> (i32, i32, i32) {
    %c0_i32 = arith.constant 0 : i32
    %c0_i32_0 = arith.constant 0 : i32
    return %arg0, %arg1, %c0_i32 : i32, i32, i32
  }
}

</mosaic_0001>

<llo_original>
// kernel: _forward.1
$region0: #{_forward.1}
  #allocation0 [shape = 'u32[]', space=smem, size = 0x4, offset = 0x4, fixed_abs, tag = 'smem constant byte address 0x4 - core index']
  #allocation1 [shape = 'u32[144,128]{1,0:T(1,128)}', space=vmem, size = 0x12000, scoped, tag = 'internal scratch']
  #allocation2 [shape = 'f32[16,128]{1,0:T(8,128)}', space=vmem, size = 0x2000, scoped, tag = 'scratch operand']
  %s0 = inlined_call_operand.vmem [shape: bf16[2,16,16], index: 0, kind: input, shape index: {}]
  %s1 = inlined_call_operand.vmem [shape: bf16[16,128], index: 1, kind: input, shape index: {}]
  %s2 = inlined_call_operand.vmem [shape: f32[128,128], index: 2, kind: input, shape index: {}]
  %s3 = inlined_call_operand.vmem [shape: f32[1,128], index: 3, kind: input, shape index: {}]
  %s4 = inlined_call_operand.vmem [shape: f32[1,128], index: 4, kind: input, shape index: {}]
  %s5 = inlined_call_operand.vmem [shape: f32[1,128], index: 5, kind: input, shape index: {}]
  %s6 = inlined_call_operand.vmem [shape: f32[1,128], index: 6, kind: input, shape index: {}]
  %s7 = inlined_call_operand.vmem [shape: f32[128,128], index: 7, kind: input, shape index: {}]
  %s8 = inlined_call_operand.vmem [shape: f32[1,128], index: 8, kind: input, shape index: {}]
  %s9 = inlined_call_operand.hbm [shape: f32[2,16,128], index: 9, kind: output, shape index: {}]
  %s10 = sld [smem:[#allocation0]]
  $region81: #{_forward.1} parent=0
    _
  %s12 = ssub.s32 1, %s10
  %s13 = scalar_select 0, %s12, %s10
  $region1: #{_forward.1} parent=0
    #allocation3 [shape = 'u8[16384]{0}', space=vmem, size = 0x4000, scoped, tag = 'output window, operand 0']
    #allocation4 [shape = 's32[2]{0}', space=sflag, size = 0x8, scoped, tag = 'scoped memory for _forward.1']
    %14 = vsyncpa [#allocation4], 0
    %s15 = scalar_lea.sflag [#allocation4], 1
    %16 = vsyncpa %s15, 0
    loop: start=0, step=1, limit=4
    $region2: #{_forward.1} parent=1 // loop_pre_header
      _
    $region3: #{_forward.1} parent=1 // loop_header
      %s18 = sphi 0, %s22
      %p19 = scmp.ge.s32.totalorder %s18, 4
      %s25 = sphi 0, %s44
      %s26 = sphi 0, %s40
      %s27 = sphi 0, %s36
      %s28 = sphi 0, %s25
      %s29 = sphi 0, %s26
      %s30 = sphi 0, %s27
      %s31 = sphi 0, %s28
      %s32 = sphi 0, %s29
      %s33 = sphi 0, %s30
      %s51 = sphi 0, %s53
      %s54 = sphi 0, %s51
      %s55 = sphi 0, %s54
      %s71 = sphi 0, %s55
      %s77 = sphi 0, %s79
      %s80 = sphi 0, %s77
      %s81 = sphi 0, %s80
      %s97 = sphi 0, %s81
      %s101 = sphi 0, %s101
      %s103 = sphi 0, %s101
      %s104 = sphi 0, %s103
      %s118 = sphi 0, %s104
      %s122 = sphi 0, %s122
      %s124 = sphi 0, %s122
      %s125 = sphi 0, %s124
      %s139 = sphi 0, %s125
      %s143 = sphi 0, %s143
      %s145 = sphi 0, %s143
      %s146 = sphi 0, %s145
      %s160 = sphi 0, %s146
      %s164 = sphi 0, %s164
      %s166 = sphi 0, %s164
      %s167 = sphi 0, %s166
      %s181 = sphi 0, %s167
      %s185 = sphi 0, %s185
      %s187 = sphi 0, %s185
      %s188 = sphi 0, %s187
      %s202 = sphi 0, %s188
      %s206 = sphi 0, %s206
      %s208 = sphi 0, %s206
      %s209 = sphi 0, %s208
      %s223 = sphi 0, %s209
      %s227 = sphi 0, %s227
      %s229 = sphi 0, %s227
      %s230 = sphi 0, %s229
      %s244 = sphi 0, %s230
      %s252 = sphi 0, %s254
      %s255 = sphi 0, %s252
      %s256 = sphi 0, %s255
      %s272 = sphi 0, %s256
    $region4: #{_forward.1} parent=1 // loop_header_branch
      %21 = sbr.rel (%p19) target = $region8
    $region5: #{_forward.1} parent=1 // loop_body
      %s23 = ssub.s32 %s18, 1
      %s24 = ssub.s32 %s18, 2
      %s34 = sadd.s32 1, %s27
      %p35 = scmp.ge.s32.totalorder %s34, 1
      %s36 = scalar_select %p35, 0, %s34
      %s37 = sadd.s32 1, %s26
      %s38 = scalar_select %p35, %s37, %s26
      %p39 = scmp.ge.s32.totalorder %s38, 1
      %s40 = scalar_select %p39, 0, %s38
      %s41 = sadd.s32 1, %s25
      %s42 = scalar_select %p39, %s41, %s25
      %p43 = scmp.ge.s32.totalorder %s42, 2
      %s44 = scalar_select %p43, 0, %s42
      %s45 = ssub.s32 %s25, %s44
      %s46 = ssub.s32 %s26, %s40
      %s47 = sor.u32 %s45, %s46
      %s48 = ssub.s32 %s27, %s36
      %s49 = sor.u32 %s47, %s48
      %p50 = scmp.eq.s32.totalorder %s49, 0
      %s52 = sadd.s32 %s51, 1
      %s53 = scalar_select %p50, %s51, %s52
      %p56 = pneg %p50
      %p57 = scmp.eq.s32.totalorder %s18, 1
      %p58 = por %p56, %p57
      %p59 = scmp.ne.s32.totalorder %s51, %s54
      %p60 = scmp.eq.s32.totalorder %s18, 0
      %p61 = por %p59, %p60
      %p62 = scmp.ne.s32.totalorder %s51, %s54
      %p63 = scmp.eq.s32.totalorder %s23, 1
      %p64 = por %p62, %p63
      %p65 = scmp.ne.s32.totalorder %s54, %s55
      %p66 = scmp.eq.s32.totalorder %s23, 0
      %p67 = por %p65, %p66
      %p68 = scmp.ne.s32.totalorder %s54, %s55
      %p69 = scmp.eq.s32.totalorder %s24, 1
      %p70 = por %p68, %p69
      %p72 = scmp.ne.s32.totalorder %s55, %s71
      %p73 = scmp.eq.s32.totalorder %s24, 0
      %p74 = por %p72, %p73
      %s75 = ssub.s32 %s27, %s36
      %p76 = scmp.eq.s32.totalorder %s75, 0
      %s78 = sadd.s32 %s77, 1
      %s79 = scalar_select %p76, %s77, %s78
      %p82 = pneg %p76
      %p83 = scmp.eq.s32.totalorder %s18, 1
      %p84 = por %p82, %p83
      %p85 = scmp.ne.s32.totalorder %s77, %s80
      %p86 = scmp.eq.s32.totalorder %s18, 0
      %p87 = por %p85, %p86
      %p88 = scmp.ne.s32.totalorder %s77, %s80
      %p89 = scmp.eq.s32.totalorder %s23, 1
      %p90 = por %p88, %p89
      %p91 = scmp.ne.s32.totalorder %s80, %s81
      %p92 = scmp.eq.s32.totalorder %s23, 0
      %p93 = por %p91, %p92
      %p94 = scmp.ne.s32.totalorder %s80, %s81
      %p95 = scmp.eq.s32.totalorder %s24, 1
      %p96 = por %p94, %p95
      %p98 = scmp.ne.s32.totalorder %s81, %s97
      %p99 = scmp.eq.s32.totalorder %s24, 0
      %p100 = por %p98, %p99
      %s102 = sadd.s32 %s101, 1
      %p105 = scmp.eq.s32.totalorder %s18, 1
      %p106 = scmp.ne.s32.totalorder %s101, %s103
      %p107 = scmp.eq.s32.totalorder %s18, 0
      %p108 = por %p106, %p107
      %p109 = scmp.ne.s32.totalorder %s101, %s103
      %p110 = scmp.eq.s32.totalorder %s23, 1
      %p111 = por %p109, %p110
      %p112 = scmp.ne.s32.totalorder %s103, %s104
      %p113 = scmp.eq.s32.totalorder %s23, 0
      %p114 = por %p112, %p113
      %p115 = scmp.ne.s32.totalorder %s103, %s104
      %p116 = scmp.eq.s32.totalorder %s24, 1
      %p117 = por %p115, %p116
      %p119 = scmp.ne.s32.totalorder %s104, %s118
      %p120 = scmp.eq.s32.totalorder %s24, 0
      %p121 = por %p119, %p120
      %s123 = sadd.s32 %s122, 1
      %p126 = scmp.eq.s32.totalorder %s18, 1
      %p127 = scmp.ne.s32.totalorder %s122, %s124
      %p128 = scmp.eq.s32.totalorder %s18, 0
      %p129 = por %p127, %p128
      %p130 = scmp.ne.s32.totalorder %s122, %s124
      %p131 = scmp.eq.s32.totalorder %s23, 1
      %p132 = por %p130, %p131
      %p133 = scmp.ne.s32.totalorder %s124, %s125
      %p134 = scmp.eq.s32.totalorder %s23, 0
      %p135 = por %p133, %p134
      %p136 = scmp.ne.s32.totalorder %s124, %s125
      %p137 = scmp.eq.s32.totalorder %s24, 1
      %p138 = por %p136, %p137
      %p140 = scmp.ne.s32.totalorder %s125, %s139
      %p141 = scmp.eq.s32.totalorder %s24, 0
      %p142 = por %p140, %p141
      %s144 = sadd.s32 %s143, 1
      %p147 = scmp.eq.s32.totalorder %s18, 1
      %p148 = scmp.ne.s32.totalorder %s143, %s145
      %p149 = scmp.eq.s32.totalorder %s18, 0
      %p150 = por %p148, %p149
      %p151 = scmp.ne.s32.totalorder %s143, %s145
      %p152 = scmp.eq.s32.totalorder %s23, 1
      %p153 = por %p151, %p152
      %p154 = scmp.ne.s32.totalorder %s145, %s146
      %p155 = scmp.eq.s32.totalorder %s23, 0
      %p156 = por %p154, %p155
      %p157 = scmp.ne.s32.totalorder %s145, %s146
      %p158 = scmp.eq.s32.totalorder %s24, 1
      %p159 = por %p157, %p158
      %p161 = scmp.ne.s32.totalorder %s146, %s160
      %p162 = scmp.eq.s32.totalorder %s24, 0
      %p163 = por %p161, %p162
      %s165 = sadd.s32 %s164, 1
      %p168 = scmp.eq.s32.totalorder %s18, 1
      %p169 = scmp.ne.s32.totalorder %s164, %s166
      %p170 = scmp.eq.s32.totalorder %s18, 0
      %p171 = por %p169, %p170
      %p172 = scmp.ne.s32.totalorder %s164, %s166
      %p173 = scmp.eq.s32.totalorder %s23, 1
      %p174 = por %p172, %p173
      %p175 = scmp.ne.s32.totalorder %s166, %s167
      %p176 = scmp.eq.s32.totalorder %s23, 0
      %p177 = por %p175, %p176
      %p178 = scmp.ne.s32.totalorder %s166, %s167
      %p179 = scmp.eq.s32.totalorder %s24, 1
      %p180 = por %p178, %p179
      %p182 = scmp.ne.s32.totalorder %s167, %s181
      %p183 = scmp.eq.s32.totalorder %s24, 0
      %p184 = por %p182, %p183
      %s186 = sadd.s32 %s185, 1
      %p189 = scmp.eq.s32.totalorder %s18, 1
      %p190 = scmp.ne.s32.totalorder %s185, %s187
      %p191 = scmp.eq.s32.totalorder %s18, 0
      %p192 = por %p190, %p191
      %p193 = scmp.ne.s32.totalorder %s185, %s187
      %p194 = scmp.eq.s32.totalorder %s23, 1
      %p195 = por %p193, %p194
      %p196 = scmp.ne.s32.totalorder %s187, %s188
      %p197 = scmp.eq.s32.totalorder %s23, 0
      %p198 = por %p196, %p197
      %p199 = scmp.ne.s32.totalorder %s187, %s188
      %p200 = scmp.eq.s32.totalorder %s24, 1
      %p201 = por %p199, %p200
      %p203 = scmp.ne.s32.totalorder %s188, %s202
      %p204 = scmp.eq.s32.totalorder %s24, 0
      %p205 = por %p203, %p204
      %s207 = sadd.s32 %s206, 1
      %p210 = scmp.eq.s32.totalorder %s18, 1
      %p211 = scmp.ne.s32.totalorder %s206, %s208
      %p212 = scmp.eq.s32.totalorder %s18, 0
      %p213 = por %p211, %p212
      %p214 = scmp.ne.s32.totalorder %s206, %s208
      %p215 = scmp.eq.s32.totalorder %s23, 1
      %p216 = por %p214, %p215
      %p217 = scmp.ne.s32.totalorder %s208, %s209
      %p218 = scmp.eq.s32.totalorder %s23, 0
      %p219 = por %p217, %p218
      %p220 = scmp.ne.s32.totalorder %s208, %s209
      %p221 = scmp.eq.s32.totalorder %s24, 1
      %p222 = por %p220, %p221
      %p224 = scmp.ne.s32.totalorder %s209, %s223
      %p225 = scmp.eq.s32.totalorder %s24, 0
      %p226 = por %p224, %p225
      %s228 = sadd.s32 %s227, 1
      %p231 = scmp.eq.s32.totalorder %s18, 1
      %p232 = scmp.ne.s32.totalorder %s227, %s229
      %p233 = scmp.eq.s32.totalorder %s18, 0
      %p234 = por %p232, %p233
      %p235 = scmp.ne.s32.totalorder %s227, %s229
      %p236 = scmp.eq.s32.totalorder %s23, 1
      %p237 = por %p235, %p236
      %p238 = scmp.ne.s32.totalorder %s229, %s230
      %p239 = scmp.eq.s32.totalorder %s23, 0
      %p240 = por %p238, %p239
      %p241 = scmp.ne.s32.totalorder %s229, %s230
      %p242 = scmp.eq.s32.totalorder %s24, 1
      %p243 = por %p241, %p242
      %p245 = scmp.ne.s32.totalorder %s230, %s244
      %p246 = scmp.eq.s32.totalorder %s24, 0
      %p247 = por %p245, %p246
      %s248 = ssub.s32 %s25, %s44
      %s249 = ssub.s32 %s26, %s40
      %s250 = sor.u32 %s248, %s249
      %p251 = scmp.eq.s32.totalorder %s250, 0
      %s253 = sadd.s32 %s252, 1
      %s254 = scalar_select %p251, %s252, %s253
      %p257 = pneg %p251
      %p258 = scmp.eq.s32.totalorder %s18, 1
      %p259 = por %p257, %p258
      %p260 = scmp.ne.s32.totalorder %s252, %s255
      %p261 = scmp.eq.s32.totalorder %s18, 0
      %p262 = por %p260, %p261
      %p263 = scmp.ne.s32.totalorder %s252, %s255
      %p264 = scmp.eq.s32.totalorder %s23, 1
      %p265 = por %p263, %p264
      %p266 = scmp.ne.s32.totalorder %s255, %s256
      %p267 = scmp.eq.s32.totalorder %s23, 0
      %p268 = por %p266, %p267
      %p269 = scmp.ne.s32.totalorder %s255, %s256
      %p270 = scmp.eq.s32.totalorder %s24, 1
      %p271 = por %p269, %p270
      %p273 = scmp.ne.s32.totalorder %s256, %s272
      %p274 = scmp.eq.s32.totalorder %s24, 0
      %p275 = por %p273, %p274
      %p276 = scmp.le.s32.totalorder 1, %s18
      %p277 = scmp.lt.s32.totalorder %s18, 3
      %p278 = pnand %p276, %p277
      %p279 = pneg %p278
      // Predicated region
      $region9: #{_forward.1} parent=5 // pred_check
        _
      $region10: #{_forward.1} parent=5 // pred_check_branch
        %281 = sbr.rel (%p278) target = $region12
      $region11: #{_forward.1} parent=5 // pred_region
        %s282 = ssub.s32 %s18, 1
        // Predicated region
        $region13: #{_forward.1} parent=11 // pred_check
          %p283 = pneg %p93
        $region14: #{_forward.1} parent=11 // pred_check_branch
          %285 = sbr.rel (%p283) target = $region16
        $region15: #{_forward.1} parent=11 // pred_region
          %s286 = smul.u32 2, %s30
          %p287 = scmp.lt.s32.totalorder %s286, 1
          %s288 = scalar_select %p287, %s286, 1
          %s289 = smul.addr %s288, 4
          %s290 = scalar_lea.vmem %s1, %s289
          %s291 = smul.u32 2, %s30
        $region16: #{_forward.1} parent=11 // pred_fallthru
          _
        // Predicated region
        $region17: #{_forward.1} parent=11 // pred_check
          %p292 = pneg %p114
        $region18: #{_forward.1} parent=11 // pred_check_branch
          %294 = sbr.rel (%p292) target = $region20
        $region19: #{_forward.1} parent=11 // pred_region
          _
        $region20: #{_forward.1} parent=11 // pred_fallthru
          _
        // Predicated region
        $region21: #{_forward.1} parent=11 // pred_check
          %p295 = pneg %p135
        $region22: #{_forward.1} parent=11 // pred_check_branch
          %297 = sbr.rel (%p295) target = $region24
        $region23: #{_forward.1} parent=11 // pred_region
          _
        $region24: #{_forward.1} parent=11 // pred_fallthru
          _
        // Predicated region
        $region25: #{_forward.1} parent=11 // pred_check
          %p298 = pneg %p156
        $region26: #{_forward.1} parent=11 // pred_check_branch
          %300 = sbr.rel (%p298) target = $region28
        $region27: #{_forward.1} parent=11 // pred_region
          _
        $region28: #{_forward.1} parent=11 // pred_fallthru
          _
        // Predicated region
        $region29: #{_forward.1} parent=11 // pred_check
          %p301 = pneg %p177
        $region30: #{_forward.1} parent=11 // pred_check_branch
          %303 = sbr.rel (%p301) target = $region32
        $region31: #{_forward.1} parent=11 // pred_region
          _
        $region32: #{_forward.1} parent=11 // pred_fallthru
          _
        // Predicated region
        $region33: #{_forward.1} parent=11 // pred_check
          %p304 = pneg %p198
        $region34: #{_forward.1} parent=11 // pred_check_branch
          %306 = sbr.rel (%p304) target = $region36
        $region35: #{_forward.1} parent=11 // pred_region
          _
        $region36: #{_forward.1} parent=11 // pred_fallthru
          _
        // Predicated region
        $region37: #{_forward.1} parent=11 // pred_check
          %p307 = pneg %p219
        $region38: #{_forward.1} parent=11 // pred_check_branch
          %309 = sbr.rel (%p307) target = $region40
        $region39: #{_forward.1} parent=11 // pred_region
          _
        $region40: #{_forward.1} parent=11 // pred_fallthru
          _
        // Predicated region
        $region41: #{_forward.1} parent=11 // pred_check
          %p310 = pneg %p240
        $region42: #{_forward.1} parent=11 // pred_check_branch
          %312 = sbr.rel (%p310) target = $region44
        $region43: #{_forward.1} parent=11 // pred_region
          _
        $region44: #{_forward.1} parent=11 // pred_fallthru
          _
      $region12: #{_forward.1} parent=5 // pred_fallthru
        _
      %p313 = scmp.lt.s32.totalorder %s18, 2
      // Predicated region
      $region45: #{_forward.1} parent=5 // pred_check
        %p314 = pneg %p313
      $region46: #{_forward.1} parent=5 // pred_check_branch
        %316 = sbr.rel (%p314) target = $region48
      $region47: #{_forward.1} parent=5 // pred_region
        // Predicated region
        $region49: #{_forward.1} parent=47 // pred_check
          %p317 = pneg %p61
        $region50: #{_forward.1} parent=47 // pred_check_branch
          %319 = sbr.rel (%p317) target = $region52
        $region51: #{_forward.1} parent=47 // pred_region
          %s320 = smul.u32 2, %s26
          %p321 = scmp.lt.s32.totalorder %s25, 1
          %s322 = scalar_select %p321, %s25, 1
          %p323 = scmp.lt.s32.totalorder %s320, 1
          %s324 = scalar_select %p323, %s320, 1
          %p325 = scmp.lt.s32.totalorder %s27, 0
          %s326 = scalar_select %p325, %s27, 0
          %s327 = sadd.s32 %s326, %s324
          %s328 = smul.addr %s322, 2
          %s329 = sadd.s32 %s327, %s328
          %s330 = smul.addr %s329, 4
          %s331 = scalar_lea.vmem %s0, %s330
          %s332 = smul.u32 2, %s26
        $region52: #{_forward.1} parent=47 // pred_fallthru
          _
      $region48: #{_forward.1} parent=5 // pred_fallthru
        _
      %p333 = scmp.le.s32.totalorder 1, %s18
      %p334 = scmp.lt.s32.totalorder %s18, 3
      %p335 = pnand %p333, %p334
      %p336 = pneg %p335
      // Predicated region
      $region53: #{_forward.1} parent=5 // pred_check
        _
      $region54: #{_forward.1} parent=5 // pred_check_branch
        %338 = sbr.rel (%p335) target = $region56
      $region55: #{_forward.1} parent=5 // pred_region
        %s339 = ssub.s32 %s18, 1
        %s340 = smul.u32 2, %s29
        %p341 = scmp.lt.s32.totalorder %s28, 1
        %s342 = scalar_select %p341, %s28, 1
        %p343 = scmp.lt.s32.totalorder %s340, 1
        %s344 = scalar_select %p343, %s340, 1
        %p345 = scmp.lt.s32.totalorder %s30, 0
        %s346 = scalar_select %p345, %s30, 0
        %s347 = sadd.s32 %s346, %s344
        %s348 = smul.addr %s342, 2
        %s349 = sadd.s32 %s347, %s348
        %s350 = smul.addr %s349, 4
        %s351 = scalar_lea.vmem %s0, %s350
        %p352 = pneg %p67
        %p353 = pneg %p64
        %s354 = smul.u32 2, %s30
        %p355 = scmp.lt.s32.totalorder %s354, 1
        %s356 = scalar_select %p355, %s354, 1
        %s357 = smul.addr %s356, 4
        %s358 = scalar_lea.vmem %s1, %s357
        %p359 = pneg %p93
        %p360 = pneg %p90
        %p361 = pneg %p114
        %p362 = pneg %p111
        %p363 = pneg %p135
        %p364 = pneg %p132
        %p365 = pneg %p156
        %p366 = pneg %p153
        %p367 = pneg %p177
        %p368 = pneg %p174
        %p369 = pneg %p198
        %p370 = pneg %p195
        %p371 = pneg %p219
        %p372 = pneg %p216
        %p373 = pneg %p240
        %p374 = pneg %p237
        %p375 = pneg %p268
        %p376 = pneg %p265
        %s377 = sand.u32 %s255, 1
        %s378 = scalar_lea.sflag [#allocation4], %s377
        %s379 = sand.u32 %s255, 1
        %s380 = smul.addr %s379, 16
        %s381 = scalar_lea.vmem [#allocation3], %s380
        %s382 = smul.u32 2, %s29
        %p383 = scmp.lt.s32.totalorder %s28, 1
        %s384 = scalar_select %p383, %s28, 1
        %p385 = scmp.lt.s32.totalorder %s382, 1
        %s386 = scalar_select %p385, %s382, 1
        %p387 = scmp.lt.s32.totalorder %s30, 0
        %s388 = scalar_select %p387, %s30, 0
        %s389 = sadd.s32 %s388, %s386
        %s390 = smul.addr %s384, 2
        %s391 = sadd.s32 %s389, %s390
        %s392 = smul.addr %s391, 4
        %s393 = scalar_lea.vmem %s0, %s392
        %s394 = smul.u32 2, %s29
        %s395 = smul.u32 2, %s30
        %p396 = scmp.lt.s32.totalorder %s395, 1
        %s397 = scalar_select %p396, %s395, 1
        %s398 = smul.addr %s397, 4
        %s399 = scalar_lea.vmem %s1, %s398
        %s400 = smul.u32 2, %s30
        %s401 = smul.u32 2, %s29
        %v403 = vld [vmem:[%s393] sm:$0xf]
        %v404 = vld [vmem:[%s393 + $0x4] sm:$0xf]
        %v405 = vld [vmem:[%s399] sm:$0xf]
        %v406 = vld [vmem:[%s399 + $0x4] sm:$0xf]
        %v409 = vunpack.c.l.b16 %v403
        %v410 = vunpack.c.l.b16 %v404
        %v411 = vpack.c.b16 %v410, %v409
        %v414 = vunpack.c.l.b16 %v405
        %v415 = vunpack.c.l.b16 %v406
        %v416 = vpack.c.b16 %v415, %v414
        %vm418 = vcmask 130048
        %v420 = vsel %vm418, %v411, 0
        %422 = vmatprep.subr.bf16.mxu0 0
        %423 = vmatpush1.bf16.msra.mxu0 %v416
        %424 = vmatprep.subr.bf16.mxu0 0
        %425 = vmatpush1.bf16.msra.mxu0 0
        %426 = vmatprep.subr.bf16.mxu0 0
        %427 = vmatpush1.bf16.msra.mxu0 0
        %428 = vmatprep.subr.bf16.mxu0 0
        %429 = vmatpush1.bf16.msra.mxu0 0
        %430 = vmatprep.subr.bf16.mxu0 0
        %431 = vmatpush1.bf16.msra.mxu0 0
        %432 = vmatprep.subr.bf16.mxu0 0
        %433 = vmatpush1.bf16.msra.mxu0 0
        %434 = vmatprep.subr.bf16.mxu0 0
        %435 = vmatpush1.bf16.msra.mxu0 0
        %436 = vmatprep.subr.bf16.mxu0 0
        %437 = vmatpush1.bf16.msra.mxu0 0
        %438 = vmatprep.subr.bf16.mxu0 0
        %439 = vmatpush1.bf16.msra.mxu0 0
        %440 = vmatprep.subr.bf16.mxu0 0
        %441 = vmatpush1.bf16.msra.mxu0 0
        %442 = vmatprep.subr.bf16.mxu0 0
        %443 = vmatpush1.bf16.msra.mxu0 0
        %444 = vmatprep.subr.bf16.mxu0 0
        %445 = vmatpush1.bf16.msra.mxu0 0
        %446 = vmatprep.subr.bf16.mxu0 0
        %447 = vmatpush1.bf16.msra.mxu0 0
        %448 = vmatprep.subr.bf16.mxu0 0
        %449 = vmatpush1.bf16.msra.mxu0 0
        %450 = vmatprep.subr.bf16.mxu0 0
        %451 = vmatpush1.bf16.msra.mxu0 0
        %452 = vmatprep.subr.bf16.mxu0 0
        %453 = vmatpush1.bf16.msra.mxu0 0
        %454 = vmatprep.mubr.bf16.mxu0 0
        %455 = vmatmul.mubr.bf16.gmra.mrb[0].mxu0 %v420
        %v456 = vpop.f32.mrb[0].mxu0
        %v457 = vadd.f32 0.0, %v456
        %v458 = vpop.f32.mrb[0].mxu0
        %v459 = vpop.f32.mrb[0].mxu0
        %v460 = vadd.f32 0.0, %v459
        %v461 = vpop.f32.mrb[0].mxu0
        %462 = vdwg.mxu0
        %p463 = scmp.eq.s32.totalorder %s30, 0
        // Predicated region
        $region57: #{_forward.1} parent=55 // pred_check
          %p464 = pneg %p463
        $region58: #{_forward.1} parent=55 // pred_check_branch
          %466 = sbr.rel (%p464) target = $region60
        $region59: #{_forward.1} parent=55 // pred_region
          %467 = vst [vmem:[#allocation2] sm:$0xff] %v457
          %468 = vst [vmem:[#allocation2 + $0x8] sm:$0xff] %v460
        $region60: #{_forward.1} parent=55 // pred_fallthru
          _
        %p469 = scmp.ne.s32.totalorder %s30, 0
        // Predicated region
        $region61: #{_forward.1} parent=55 // pred_check
          %p470 = pneg %p469
        $region62: #{_forward.1} parent=55 // pred_check_branch
          %472 = sbr.rel (%p470) target = $region64
        $region63: #{_forward.1} parent=55 // pred_region
          %v473 = vld [vmem:[#allocation2] sm:$0xff]
          %v474 = vld [vmem:[#allocation2 + $0x8] sm:$0xff]
          %v475 = vadd.f32 %v473, %v457
          %v476 = vadd.f32 %v474, %v460
          %477 = vst [vmem:[#allocation2] sm:$0xff] %v475
          %478 = vst [vmem:[#allocation2 + $0x8] sm:$0xff] %v476
        $region64: #{_forward.1} parent=55 // pred_fallthru
          _
        // Predicated region
        $region65: #{_forward.1} parent=55 // pred_check
          %p479 = pneg %p463
        $region66: #{_forward.1} parent=55 // pred_check_branch
          %481 = sbr.rel (%p479) target = $region68
        $region67: #{_forward.1} parent=55 // pred_region
          %v482 = vld [vmem:[#allocation2] sm:$0xff]
          %v483 = vld [vmem:[#allocation2 + $0x8] sm:$0xff]
          %v484 = vld [vmem:[%s2] sm:$0xff]
          %v485 = vld [vmem:[%s2 + $0x8] sm:$0xff]
          %v486 = vld [vmem:[%s2 + $0x10] sm:$0xff]
          %v487 = vld [vmem:[%s2 + $0x18] sm:$0xff]
          %v488 = vld [vmem:[%s2 + $0x20] sm:$0xff]
          %v489 = vld [vmem:[%s2 + $0x28] sm:$0xff]
          %v490 = vld [vmem:[%s2 + $0x30] sm:$0xff]
          %v491 = vld [vmem:[%s2 + $0x38] sm:$0xff]
          %v492 = vld [vmem:[%s2 + $0x40] sm:$0xff]
          %v493 = vld [vmem:[%s2 + $0x48] sm:$0xff]
          %v494 = vld [vmem:[%s2 + $0x50] sm:$0xff]
          %v495 = vld [vmem:[%s2 + $0x58] sm:$0xff]
          %v496 = vld [vmem:[%s2 + $0x60] sm:$0xff]
          %v497 = vld [vmem:[%s2 + $0x68] sm:$0xff]
          %v498 = vld [vmem:[%s2 + $0x70] sm:$0xff]
          %v499 = vld [vmem:[%s2 + $0x78] sm:$0xff]
          %v500 = vld [vmem:[%s3] sm:$0x1]
          %v502 = vlaneseq
          %v503 = vshrl.u32 %v502, 7
          %v504 = vsub.s32 0, %v503
          %v505 = vrot.slane %v500, %v504
          %507 = vmatprep.subr.mxu0 0.0
          %508 = vmatpush1.msra.mxu0 %v484
          %509 = vmatprep.subr.mxu0 0.0
          %510 = vmatpush1.msra.mxu0 %v485
          %511 = vmatprep.subr.mxu0 0.0
          %512 = vmatpush1.msra.mxu0 %v486
          %513 = vmatprep.subr.mxu0 0.0
          %514 = vmatpush1.msra.mxu0 %v487
          %515 = vmatprep.subr.mxu0 0.0
          %516 = vmatpush1.msra.mxu0 %v488
          %517 = vmatprep.subr.mxu0 0.0
          %518 = vmatpush1.msra.mxu0 %v489
          %519 = vmatprep.subr.mxu0 0.0
          %520 = vmatpush1.msra.mxu0 %v490
          %521 = vmatprep.subr.mxu0 0.0
          %522 = vmatpush1.msra.mxu0 %v491
          %523 = vmatprep.subr.mxu0 0.0
          %524 = vmatpush1.msra.mxu0 %v492
          %525 = vmatprep.subr.mxu0 0.0
          %526 = vmatpush1.msra.mxu0 %v493
          %527 = vmatprep.subr.mxu0 0.0
          %528 = vmatpush1.msra.mxu0 %v494
          %529 = vmatprep.subr.mxu0 0.0
          %530 = vmatpush1.msra.mxu0 %v495
          %531 = vmatprep.subr.mxu0 0.0
          %532 = vmatpush1.msra.mxu0 %v496
          %533 = vmatprep.subr.mxu0 0.0
          %534 = vmatpush1.msra.mxu0 %v497
          %535 = vmatprep.subr.mxu0 0.0
          %536 = vmatpush1.msra.mxu0 %v498
          %537 = vmatprep.subr.mxu0 0.0
          %538 = vmatpush1.msra.mxu0 %v499
          %539 = vmatprep.subr.mxu0 0.0
          %540 = vmatpush1.msra.mxu0 0.0
          %541 = vmatprep.subr.mxu0 0.0
          %542 = vmatpush1.msra.mxu0 0.0
          %543 = vmatprep.subr.mxu0 0.0
          %544 = vmatpush1.msra.mxu0 0.0
          %545 = vmatprep.subr.mxu0 0.0
          %546 = vmatpush1.msra.mxu0 0.0
          %547 = vmatprep.subr.mxu0 0.0
          %548 = vmatpush1.msra.mxu0 0.0
          %549 = vmatprep.subr.mxu0 0.0
          %550 = vmatpush1.msra.mxu0 0.0
          %551 = vmatprep.subr.mxu0 0.0
          %552 = vmatpush1.msra.mxu0 0.0
          %553 = vmatprep.subr.mxu0 0.0
          %554 = vmatpush1.msra.mxu0 0.0
          %555 = vmatprep.subr.mxu0 0.0
          %556 = vmatpush1.msra.mxu0 0.0
          %557 = vmatprep.subr.mxu0 0.0
          %558 = vmatpush1.msra.mxu0 0.0
          %559 = vmatprep.subr.mxu0 0.0
          %560 = vmatpush1.msra.mxu0 0.0
          %561 = vmatprep.subr.mxu0 0.0
          %562 = vmatpush1.msra.mxu0 0.0
          %563 = vmatprep.subr.mxu0 0.0
          %564 = vmatpush1.msra.mxu0 0.0
          %565 = vmatprep.subr.mxu0 0.0
          %566 = vmatpush1.msra.mxu0 0.0
          %567 = vmatprep.subr.mxu0 0.0
          %568 = vmatpush1.msra.mxu0 0.0
          %569 = vmatprep.subr.mxu0 0.0
          %570 = vmatpush1.msra.mxu0 0.0
          %571 = vmatprep.mubr.f32.mxu0 0.0
          %572 = vmatmul.mubr.f32.gmra.mrb[0].mxu0 %v482
          %v573 = vpop.f32.mrb[0].mxu0
          %v574 = vadd.f32 %v505, %v573
          %v575 = vpop.f32.mrb[0].mxu0
          %576 = vmatprep.mubr.f32.mxu0 0.0
          %577 = vmatmul.mubr.f32.gmra.mrb[0].mxu0 %v483
          %v578 = vpop.f32.mrb[0].mxu0
          %v579 = vadd.f32 %v505, %v578
          %v580 = vpop.f32.mrb[0].mxu0
          %581 = vdwg.mxu0
          %582 = vadd.xlane.f32.xlu0 %v574
          %v583 = vpop.xlane.xlu0 %582
          %584 = vadd.xlane.f32.xlu0 %v579
          %v585 = vpop.xlane.xlu0 %584
          %v586 = vmul.f32 %v583, 0.03125
          %v587 = vmul.f32 %v585, 0.03125
          %v588 = vsub.f32 %v574, %v586
          %v589 = vsub.f32 %v579, %v587
          %v590 = vld [vmem:[%s6] sm:$0x1]
          %v592 = vlaneseq
          %v593 = vshrl.u32 %v592, 7
          %v594 = vsub.s32 0, %v593
          %v595 = vrot.slane %v590, %v594
          %v597 = vmul.f32 %v588, %v595
          %v598 = vmul.f32 %v589, %v595
          %v599 = vmul.f32 %v597, %v597
          %v600 = vmul.f32 %v598, %v598
          %601 = vadd.xlane.f32.xlu0 %v599
          %v602 = vpop.xlane.xlu0 %601
          %603 = vadd.xlane.f32.xlu0 %v600
          %v604 = vpop.xlane.xlu0 %603
          %v605 = vmul.f32 %v602, 0.03125
          %v606 = vmul.f32 %v604, 0.03125
          %v607 = vadd.f32 %v605, 1e-05
          %v608 = vadd.f32 %v606, 1e-05
          %v609 = vrsqrt.pop %v607
          %v610 = vrsqrt.pop %v608
          %v611 = vmul.f32 %v597, %v609
          %v612 = vmul.f32 %v598, %v610
          %v613 = vld [vmem:[%s4] sm:$0x1]
          %v615 = vlaneseq
          %v616 = vshrl.u32 %v615, 7
          %v617 = vsub.s32 0, %v616
          %v618 = vrot.slane %v613, %v617
          %v620 = vmul.f32 %v611, %v618
          %v621 = vmul.f32 %v612, %v618
          %v622 = vld [vmem:[%s5] sm:$0x1]
          %v624 = vlaneseq
          %v625 = vshrl.u32 %v624, 7
          %v626 = vsub.s32 0, %v625
          %v627 = vrot.slane %v622, %v626
          %v629 = vadd.f32 %v620, %v627
          %v630 = vadd.f32 %v621, %v627
          %v631 = vmul.f32 %v629, 0.5
          %v632 = vmul.f32 %v630, 0.5
          %v633 = vmul.f32 %v629, 0.70710677
          %v634 = vmul.f32 %v630, 0.70710677
          %v635 = verf.f32.pop %v633
          %v636 = verf.f32.pop %v634
          %v637 = vadd.f32 %v635, 1.0
          %v638 = vadd.f32 %v636, 1.0
          %v639 = vmul.f32 %v631, %v637
          %v640 = vmul.f32 %v632, %v638
          %v641 = vld [vmem:[%s7] sm:$0xff]
          %v642 = vld [vmem:[%s7 + $0x8] sm:$0xff]
          %v643 = vld [vmem:[%s7 + $0x10] sm:$0xff]
          %v644 = vld [vmem:[%s7 + $0x18] sm:$0xff]
          %v645 = vld [vmem:[%s7 + $0x20] sm:$0xff]
          %v646 = vld [vmem:[%s7 + $0x28] sm:$0xff]
          %v647 = vld [vmem:[%s7 + $0x30] sm:$0xff]
          %v648 = vld [vmem:[%s7 + $0x38] sm:$0xff]
          %v649 = vld [vmem:[%s7 + $0x40] sm:$0xff]
          %v650 = vld [vmem:[%s7 + $0x48] sm:$0xff]
          %v651 = vld [vmem:[%s7 + $0x50] sm:$0xff]
          %v652 = vld [vmem:[%s7 + $0x58] sm:$0xff]
          %v653 = vld [vmem:[%s7 + $0x60] sm:$0xff]
          %v654 = vld [vmem:[%s7 + $0x68] sm:$0xff]
          %v655 = vld [vmem:[%s7 + $0x70] sm:$0xff]
          %v656 = vld [vmem:[%s7 + $0x78] sm:$0xff]
          %v657 = vld [vmem:[%s8] sm:$0x1]
          %v659 = vlaneseq
          %v660 = vshrl.u32 %v659, 7
          %v661 = vsub.s32 0, %v660
          %v662 = vrot.slane %v657, %v661
          %664 = vmatprep.subr.mxu0 0.0
          %665 = vmatpush1.msra.mxu0 %v641
          %666 = vmatprep.subr.mxu0 0.0
          %667 = vmatpush1.msra.mxu0 %v642
          %668 = vmatprep.subr.mxu0 0.0
          %669 = vmatpush1.msra.mxu0 %v643
          %670 = vmatprep.subr.mxu0 0.0
          %671 = vmatpush1.msra.mxu0 %v644
          %672 = vmatprep.subr.mxu0 0.0
          %673 = vmatpush1.msra.mxu0 %v645
          %674 = vmatprep.subr.mxu0 0.0
          %675 = vmatpush1.msra.mxu0 %v646
          %676 = vmatprep.subr.mxu0 0.0
          %677 = vmatpush1.msra.mxu0 %v647
          %678 = vmatprep.subr.mxu0 0.0
          %679 = vmatpush1.msra.mxu0 %v648
          %680 = vmatprep.subr.mxu0 0.0
          %681 = vmatpush1.msra.mxu0 %v649
          %682 = vmatprep.subr.mxu0 0.0
          %683 = vmatpush1.msra.mxu0 %v650
          %684 = vmatprep.subr.mxu0 0.0
          %685 = vmatpush1.msra.mxu0 %v651
          %686 = vmatprep.subr.mxu0 0.0
          %687 = vmatpush1.msra.mxu0 %v652
          %688 = vmatprep.subr.mxu0 0.0
          %689 = vmatpush1.msra.mxu0 %v653
          %690 = vmatprep.subr.mxu0 0.0
          %691 = vmatpush1.msra.mxu0 %v654
          %692 = vmatprep.subr.mxu0 0.0
          %693 = vmatpush1.msra.mxu0 %v655
          %694 = vmatprep.subr.mxu0 0.0
          %695 = vmatpush1.msra.mxu0 %v656
          %696 = vmatprep.subr.mxu0 0.0
          %697 = vmatpush1.msra.mxu0 0.0
          %698 = vmatprep.subr.mxu0 0.0
          %699 = vmatpush1.msra.mxu0 0.0
          %700 = vmatprep.subr.mxu0 0.0
          %701 = vmatpush1.msra.mxu0 0.0
          %702 = vmatprep.subr.mxu0 0.0
          %703 = vmatpush1.msra.mxu0 0.0
          %704 = vmatprep.subr.mxu0 0.0
          %705 = vmatpush1.msra.mxu0 0.0
          %706 = vmatprep.subr.mxu0 0.0
          %707 = vmatpush1.msra.mxu0 0.0
          %708 = vmatprep.subr.mxu0 0.0
          %709 = vmatpush1.msra.mxu0 0.0
          %710 = vmatprep.subr.mxu0 0.0
          %711 = vmatpush1.msra.mxu0 0.0
          %712 = vmatprep.subr.mxu0 0.0
          %713 = vmatpush1.msra.mxu0 0.0
          %714 = vmatprep.subr.mxu0 0.0
          %715 = vmatpush1.msra.mxu0 0.0
          %716 = vmatprep.subr.mxu0 0.0
          %717 = vmatpush1.msra.mxu0 0.0
          %718 = vmatprep.subr.mxu0 0.0
          %719 = vmatpush1.msra.mxu0 0.0
          %720 = vmatprep.subr.mxu0 0.0
          %721 = vmatpush1.msra.mxu0 0.0
          %722 = vmatprep.subr.mxu0 0.0
          %723 = vmatpush1.msra.mxu0 0.0
          %724 = vmatprep.subr.mxu0 0.0
          %725 = vmatpush1.msra.mxu0 0.0
          %726 = vmatprep.subr.mxu0 0.0
          %727 = vmatpush1.msra.mxu0 0.0
          %728 = vmatprep.mubr.f32.mxu0 0.0
          %729 = vmatmul.mubr.f32.gmra.mrb[0].mxu0 %v639
          %v730 = vpop.f32.mrb[0].mxu0
          %v731 = vadd.f32 %v662, %v730
          %v732 = vpop.f32.mrb[0].mxu0
          %733 = vmatprep.mubr.f32.mxu0 0.0
          %734 = vmatmul.mubr.f32.gmra.mrb[0].mxu0 %v640
          %v735 = vpop.f32.mrb[0].mxu0
          %v736 = vadd.f32 %v662, %v735
          %v737 = vpop.f32.mrb[0].mxu0
          %738 = vdwg.mxu0
          %739 = vst [vmem:[%s381] sm:$0xff] %v731
          %740 = vst [vmem:[%s381 + $0x8] sm:$0xff] %v736
        $region68: #{_forward.1} parent=55 // pred_fallthru
          _
        %s741 = sand.u32 %s255, 1
        %s742 = scalar_lea.sflag [#allocation4], %s741
        %s743 = sand.u32 %s255, 1
        %s744 = smul.addr %s743, 16
        %s745 = scalar_lea.vmem [#allocation3], %s744
        // Predicated region
        $region69: #{_forward.1} parent=55 // pred_check
          %p746 = pneg %p265
        $region70: #{_forward.1} parent=55 // pred_check_branch
          %748 = sbr.rel (%p746) target = $region72
        $region71: #{_forward.1} parent=55 // pred_region
          %s749 = smul.u32 2, %s29
          %s751 = ssub.s32 256, 256
          %752 = vsyncadd %s742, %s751
          %s753 = smul.addr %s28, 2
          %s754 = sadd.s32 %s749, %s753
          %s755 = smul.addr %s754, 128
          %s756 = scalar_lea.hbm %s9, %s755
          %s757 = sshll.u32 %s745, 4
          %s758 = int_to_ptr.vmem [resolvable:$true] %s757
          %763 = dma.vmem_to_hbm [thread:$0]  %s758, 256, %s756, %s742, 128, 128, 8
        $region72: #{_forward.1} parent=55 // pred_fallthru
          _
      $region56: #{_forward.1} parent=5 // pred_fallthru
        _
      %p764 = scmp.le.s32.totalorder 2, %s18
      // Predicated region
      $region73: #{_forward.1} parent=5 // pred_check
        %p765 = pneg %p764
      $region74: #{_forward.1} parent=5 // pred_check_branch
        %767 = sbr.rel (%p765) target = $region76
      $region75: #{_forward.1} parent=5 // pred_region
        %s768 = ssub.s32 %s18, 2
        // Predicated region
        $region77: #{_forward.1} parent=75 // pred_check
          %p769 = pneg %p271
        $region78: #{_forward.1} parent=75 // pred_check_branch
          %771 = sbr.rel (%p769) target = $region80
        $region79: #{_forward.1} parent=75 // pred_region
          %s772 = sand.u32 %s256, 1
          %s773 = scalar_lea.sflag [#allocation4], %s772
          %s774 = sand.u32 %s256, 1
          %s775 = smul.addr %s774, 16
          %s776 = scalar_lea.vmem [#allocation3], %s775
          %777 = dma.done %s773, 256
        $region80: #{_forward.1} parent=75 // pred_fallthru
          _
      $region76: #{_forward.1} parent=5 // pred_fallthru
        _
    $region6: #{_forward.1} parent=1 // loop_footer
      %s22 = sadd.s32 1, %s18
    $region7: #{_forward.1} parent=1 // loop_footer_branch
      %17 = sbr.rel target = $region3
    $region8: #{_forward.1} parent=1 // loop_exit
      _
    %778 = vsyncpa [#allocation4], 1
    %s779 = scalar_lea.sflag [#allocation4], 1
    %780 = vsyncpa %s779, 1

// kernel: _forward.1
$region0: #{_forward.1}
  #allocation0 [shape = 'u32[]', space=smem, size = 0x4, offset = 0x4, fixed_abs, tag = 'smem constant byte address 0x4 - core index']
  #allocation1 [shape = 'u32[144,128]{1,0:T(1,128)}', space=vmem, size = 0x12000, scoped, tag = 'internal scratch']
  #allocation2 [shape = 'f32[16,128]{1,0:T(8,128)}', space=vmem, size = 0x2000, scoped, tag = 'scratch operand']
  %s0 = inlined_call_operand.vmem [shape: bf16[2,16,16], index: 0, kind: input, shape index: {}]
  %s1 = inlined_call_operand.vmem [shape: bf16[16,128], index: 1, kind: input, shape index: {}]
  %s2 = inlined_call_operand.vmem [shape: f32[128,128], index: 2, kind: input, shape index: {}]
  %s3 = inlined_call_operand.vmem [shape: f32[1,128], index: 3, kind: input, shape index: {}]
  %s4 = inlined_call_operand.vmem [shape: f32[1,128], index: 4, kind: input, shape index: {}]
  %s5 = inlined_call_operand.vmem [shape: f32[1,128], index: 5, kind: input, shape index: {}]
  %s6 = inlined_call_operand.vmem [shape: f32[1,128], index: 6, kind: input, shape index: {}]
  %s7 = inlined_call_operand.vmem [shape: f32[128,128], index: 7, kind: input, shape index: {}]
  %s8 = inlined_call_operand.vmem [shape: f32[1,128], index: 8, kind: input, shape index: {}]
  %s9 = inlined_call_operand.hbm [shape: f32[2,16,128], index: 9, kind: output, shape index: {}]
  %s10 = sld [smem:[#allocation0]]
  $region81: #{_forward.1} parent=0
    _
  %s12 = ssub.s32 1, %s10
  %s13 = scalar_select 0, %s12, %s10
  $region1: #{_forward.1} parent=0
    #allocation3 [shape = 'u8[16384]{0}', space=vmem, size = 0x4000, scoped, tag = 'output window, operand 0']
    #allocation4 [shape = 's32[2]{0}', space=sflag, size = 0x8, scoped, tag = 'scoped memory for _forward.1']
    %14 = vsyncpa [#allocation4], 0
    %s15 = scalar_lea.sflag [#allocation4], 1
    %16 = vsyncpa %s15, 0
    loop: start=0, step=1, limit=4
    $region2: #{_forward.1} parent=1 // loop_pre_header
      _
    $region3: #{_forward.1} parent=1 // loop_header
      %s18 = sphi 0, %s22
      %p19 = scmp.ge.s32.totalorder %s18, 4
      %s25 = sphi 0, %s44
      %s26 = sphi 0, %s40
      %s27 = sphi 0, %s36
      %s28 = sphi 0, %s25
      %s29 = sphi 0, %s26
      %s30 = sphi 0, %s27
      %s31 = sphi 0, %s28
      %s32 = sphi 0, %s29
      %s33 = sphi 0, %s30
      %s51 = sphi 0, %s53
      %s54 = sphi 0, %s51
      %s55 = sphi 0, %s54
      %s71 = sphi 0, %s55
      %s77 = sphi 0, %s79
      %s80 = sphi 0, %s77
      %s81 = sphi 0, %s80
      %s97 = sphi 0, %s81
      %s101 = sphi 0, %s101
      %s103 = sphi 0, %s101
      %s104 = sphi 0, %s103
      %s118 = sphi 0, %s104
      %s122 = sphi 0, %s122
      %s124 = sphi 0, %s122
      %s125 = sphi 0, %s124
      %s139 = sphi 0, %s125
      %s143 = sphi 0, %s143
      %s145 = sphi 0, %s143
      %s146 = sphi 0, %s145
      %s160 = sphi 0, %s146
      %s164 = sphi 0, %s164
      %s166 = sphi 0, %s164
      %s167 = sphi 0, %s166
      %s181 = sphi 0, %s167
      %s185 = sphi 0, %s185
      %s187 = sphi 0, %s185
      %s188 = sphi 0, %s187
      %s202 = sphi 0, %s188
      %s206 = sphi 0, %s206
      %s208 = sphi 0, %s206
      %s209 = sphi 0, %s208
      %s223 = sphi 0, %s209
      %s227 = sphi 0, %s227
      %s229 = sphi 0, %s227
      %s230 = sphi 0, %s229
      %s244 = sphi 0, %s230
      %s252 = sphi 0, %s254
      %s255 = sphi 0, %s252
      %s256 = sphi 0, %s255
      %s272 = sphi 0, %s256
    $region4: #{_forward.1} parent=1 // loop_header_branch
      %21 = sbr.rel (%p19) target = $region8
    $region5: #{_forward.1} parent=1 // loop_body
      %s23 = ssub.s32 %s18, 1
      %s24 = ssub.s32 %s18, 2
      %s34 = sadd.s32 1, %s27
      %p35 = scmp.ge.s32.totalorder %s34, 1
      %s36 = scalar_select %p35, 0, %s34
      %s37 = sadd.s32 1, %s26
      %s38 = scalar_select %p35, %s37, %s26
      %p39 = scmp.ge.s32.totalorder %s38, 1
      %s40 = scalar_select %p39, 0, %s38
      %s41 = sadd.s32 1, %s25
      %s42 = scalar_select %p39, %s41, %s25
      %p43 = scmp.ge.s32.totalorder %s42, 2
      %s44 = scalar_select %p43, 0, %s42
      %s45 = ssub.s32 %s25, %s44
      %s46 = ssub.s32 %s26, %s40
      %s47 = sor.u32 %s45, %s46
      %s48 = ssub.s32 %s27, %s36
      %s49 = sor.u32 %s47, %s48
      %p50 = scmp.eq.s32.totalorder %s49, 0
      %s52 = sadd.s32 %s51, 1
      %s53 = scalar_select %p50, %s51, %s52
      %p56 = pneg %p50
      %p57 = scmp.eq.s32.totalorder %s18, 1
      %p58 = por %p56, %p57
      %p59 = scmp.ne.s32.totalorder %s51, %s54
      %p60 = scmp.eq.s32.totalorder %s18, 0
      %p61 = por %p59, %p60
      %p62 = scmp.ne.s32.totalorder %s51, %s54
      %p63 = scmp.eq.s32.totalorder %s23, 1
      %p64 = por %p62, %p63
      %p65 = scmp.ne.s32.totalorder %s54, %s55
      %p66 = scmp.eq.s32.totalorder %s23, 0
      %p67 = por %p65, %p66
      %p68 = scmp.ne.s32.totalorder %s54, %s55
      %p69 = scmp.eq.s32.totalorder %s24, 1
      %p70 = por %p68, %p69
      %p72 = scmp.ne.s32.totalorder %s55, %s71
      %p73 = scmp.eq.s32.totalorder %s24, 0
      %p74 = por %p72, %p73
      %s75 = ssub.s32 %s27, %s36
      %p76 = scmp.eq.s32.totalorder %s75, 0
      %s78 = sadd.s32 %s77, 1
      %s79 = scalar_select %p76, %s77, %s78
      %p82 = pneg %p76
      %p83 = scmp.eq.s32.totalorder %s18, 1
      %p84 = por %p82, %p83
      %p85 = scmp.ne.s32.totalorder %s77, %s80
      %p86 = scmp.eq.s32.totalorder %s18, 0
      %p87 = por %p85, %p86
      %p88 = scmp.ne.s32.totalorder %s77, %s80
      %p89 = scmp.eq.s32.totalorder %s23, 1
      %p90 = por %p88, %p89
      %p91 = scmp.ne.s32.totalorder %s80, %s81
      %p92 = scmp.eq.s32.totalorder %s23, 0
      %p93 = por %p91, %p92
      %p94 = scmp.ne.s32.totalorder %s80, %s81
      %p95 = scmp.eq.s32.totalorder %s24, 1
      %p96 = por %p94, %p95
      %p98 = scmp.ne.s32.totalorder %s81, %s97
      %p99 = scmp.eq.s32.totalorder %s24, 0
      %p100 = por %p98, %p99
      %s102 = sadd.s32 %s101, 1
      %p105 = scmp.eq.s32.totalorder %s18, 1
      %p106 = scmp.ne.s32.totalorder %s101, %s103
      %p107 = scmp.eq.s32.totalorder %s18, 0
      %p108 = por %p106, %p107
      %p109 = scmp.ne.s32.totalorder %s101, %s103
      %p110 = scmp.eq.s32.totalorder %s23, 1
      %p111 = por %p109, %p110
      %p112 = scmp.ne.s32.totalorder %s103, %s104
      %p113 = scmp.eq.s32.totalorder %s23, 0
      %p114 = por %p112, %p113
      %p115 = scmp.ne.s32.totalorder %s103, %s104
      %p116 = scmp.eq.s32.totalorder %s24, 1
      %p117 = por %p115, %p116
      %p119 = scmp.ne.s32.totalorder %s104, %s118
      %p120 = scmp.eq.s32.totalorder %s24, 0
      %p121 = por %p119, %p120
      %s123 = sadd.s32 %s122, 1
      %p126 = scmp.eq.s32.totalorder %s18, 1
      %p127 = scmp.ne.s32.totalorder %s122, %s124
      %p128 = scmp.eq.s32.totalorder %s18, 0
      %p129 = por %p127, %p128
      %p130 = scmp.ne.s32.totalorder %s122, %s124
      %p131 = scmp.eq.s32.totalorder %s23, 1
      %p132 = por %p130, %p131
      %p133 = scmp.ne.s32.totalorder %s124, %s125
      %p134 = scmp.eq.s32.totalorder %s23, 0
      %p135 = por %p133, %p134
      %p136 = scmp.ne.s32.totalorder %s124, %s125
      %p137 = scmp.eq.s32.totalorder %s24, 1
      %p138 = por %p136, %p137
      %p140 = scmp.ne.s32.totalorder %s125, %s139
      %p141 = scmp.eq.s32.totalorder %s24, 0
      %p142 = por %p140, %p141
      %s144 = sadd.s32 %s143, 1
      %p147 = scmp.eq.s32.totalorder %s18, 1
      %p148 = scmp.ne.s32.totalorder %s143, %s145
      %p149 = scmp.eq.s32.totalorder %s18, 0
      %p150 = por %p148, %p149
      %p151 = scmp.ne.s32.totalorder %s143, %s145
      %p152 = scmp.eq.s32.totalorder %s23, 1
      %p153 = por %p151, %p152
      %p154 = scmp.ne.s32.totalorder %s145, %s146
      %p155 = scmp.eq.s32.totalorder %s23, 0
      %p156 = por %p154, %p155
      %p157 = scmp.ne.s32.totalorder %s145, %s146
      %p158 = scmp.eq.s32.totalorder %s24, 1
      %p159 = por %p157, %p158
      %p161 = scmp.ne.s32.totalorder %s146, %s160
      %p162 = scmp.eq.s32.totalorder %s24, 0
      %p163 = por %p161, %p162
      %s165 = sadd.s32 %s164, 1
      %p168 = scmp.eq.s32.totalorder %s18, 1
      %p169 = scmp.ne.s32.totalorder %s164, %s166
      %p170 = scmp.eq.s32.totalorder %s18, 0
      %p171 = por %p169, %p170
      %p172 = scmp.ne.s32.totalorder %s164, %s166
      %p173 = scmp.eq.s32.totalorder %s23, 1
      %p174 = por %p172, %p173
      %p175 = scmp.ne.s32.totalorder %s166, %s167
      %p176 = scmp.eq.s32.totalorder %s23, 0
      %p177 = por %p175, %p176
      %p178 = scmp.ne.s32.totalorder %s166, %s167
      %p179 = scmp.eq.s32.totalorder %s24, 1
      %p180 = por %p178, %p179
      %p182 = scmp.ne.s32.totalorder %s167, %s181
      %p183 = scmp.eq.s32.totalorder %s24, 0
      %p184 = por %p182, %p183
      %s186 = sadd.s32 %s185, 1
      %p189 = scmp.eq.s32.totalorder %s18, 1
      %p190 = scmp.ne.s32.totalorder %s185, %s187
      %p191 = scmp.eq.s32.totalorder %s18, 0
      %p192 = por %p190, %p191
      %p193 = scmp.ne.s32.totalorder %s185, %s187
      %p194 = scmp.eq.s32.totalorder %s23, 1
      %p195 = por %p193, %p194
      %p196 = scmp.ne.s32.totalorder %s187, %s188
      %p197 = scmp.eq.s32.totalorder %s23, 0
      %p198 = por %p196, %p197
      %p199 = scmp.ne.s32.totalorder %s187, %s188
      %p200 = scmp.eq.s32.totalorder %s24, 1
      %p201 = por %p199, %p200
      %p203 = scmp.ne.s32.totalorder %s188, %s202
      %p204 = scmp.eq.s32.totalorder %s24, 0
      %p205 = por %p203, %p204
      %s207 = sadd.s32 %s206, 1
      %p210 = scmp.eq.s32.totalorder %s18, 1
      %p211 = scmp.ne.s32.totalorder %s206, %s208
      %p212 = scmp.eq.s32.totalorder %s18, 0
      %p213 = por %p211, %p212
      %p214 = scmp.ne.s32.totalorder %s206, %s208
      %p215 = scmp.eq.s32.totalorder %s23, 1
      %p216 = por %p214, %p215
      %p217 = scmp.ne.s32.totalorder %s208, %s209
      %p218 = scmp.eq.s32.totalorder %s23, 0
      %p219 = por %p217, %p218
      %p220 = scmp.ne.s32.totalorder %s208, %s209
      %p221 = scmp.eq.s32.totalorder %s24, 1
      %p222 = por %p220, %p221
      %p224 = scmp.ne.s32.totalorder %s209, %s223
      %p225 = scmp.eq.s32.totalorder %s24, 0
      %p226 = por %p224, %p225
      %s228 = sadd.s32 %s227, 1
      %p231 = scmp.eq.s32.totalorder %s18, 1
      %p232 = scmp.ne.s32.totalorder %s227, %s229
      %p233 = scmp.eq.s32.totalorder %s18, 0
      %p234 = por %p232, %p233
      %p235 = scmp.ne.s32.totalorder %s227, %s229
      %p236 = scmp.eq.s32.totalorder %s23, 1
      %p237 = por %p235, %p236
      %p238 = scmp.ne.s32.totalorder %s229, %s230
      %p239 = scmp.eq.s32.totalorder %s23, 0
      %p240 = por %p238, %p239
      %p241 = scmp.ne.s32.totalorder %s229, %s230
      %p242 = scmp.eq.s32.totalorder %s24, 1
      %p243 = por %p241, %p242
      %p245 = scmp.ne.s32.totalorder %s230, %s244
      %p246 = scmp.eq.s32.totalorder %s24, 0
      %p247 = por %p245, %p246
      %s248 = ssub.s32 %s25, %s44
      %s249 = ssub.s32 %s26, %s40
      %s250 = sor.u32 %s248, %s249
      %p251 = scmp.eq.s32.totalorder %s250, 0
      %s253 = sadd.s32 %s252, 1
      %s254 = scalar_select %p251, %s252, %s253
      %p257 = pneg %p251
      %p258 = scmp.eq.s32.totalorder %s18, 1
      %p259 = por %p257, %p258
      %p260 = scmp.ne.s32.totalorder %s252, %s255
      %p261 = scmp.eq.s32.totalorder %s18, 0
      %p262 = por %p260, %p261
      %p263 = scmp.ne.s32.totalorder %s252, %s255
      %p264 = scmp.eq.s32.totalorder %s23, 1
      %p265 = por %p263, %p264
      %p266 = scmp.ne.s32.totalorder %s255, %s256
      %p267 = scmp.eq.s32.totalorder %s23, 0
      %p268 = por %p266, %p267
      %p269 = scmp.ne.s32.totalorder %s255, %s256
      %p270 = scmp.eq.s32.totalorder %s24, 1
      %p271 = por %p269, %p270
      %p273 = scmp.ne.s32.totalorder %s256, %s272
      %p274 = scmp.eq.s32.totalorder %s24, 0
      %p275 = por %p273, %p274
      %p276 = scmp.le.s32.totalorder 1, %s18
      %p277 = scmp.lt.s32.totalorder %s18, 3
      %p278 = pnand %p276, %p277
      %p279 = pneg %p278
      // Predicated region
      $region9: #{_forward.1} parent=5 // pred_check
        _
      $region10: #{_forward.1} parent=5 // pred_check_branch
        %281 = sbr.rel (%p278) target = $region12
      $region11: #{_forward.1} parent=5 // pred_region
        %s282 = ssub.s32 %s18, 1
        // Predicated region
        $region13: #{_forward.1} parent=11 // pred_check
          %p283 = pneg %p93
        $region14: #{_forward.1} parent=11 // pred_check_branch
          %285 = sbr.rel (%p283) target = $region16
        $region15: #{_forward.1} parent=11 // pred_region
          %s286 = smul.u32 2, %s30
          %p287 = scmp.lt.s32.totalorder %s286, 1
          %s288 = scalar_select %p287, %s286, 1
          %s289 = smul.addr %s288, 4
          %s290 = scalar_lea.vmem %s1, %s289
          %s291 = smul.u32 2, %s30
        $region16: #{_forward.1} parent=11 // pred_fallthru
          _
        // Predicated region
        $region17: #{_forward.1} parent=11 // pred_check
          %p292 = pneg %p114
        $region18: #{_forward.1} parent=11 // pred_check_branch
          %294 = sbr.rel (%p292) target = $region20
        $region19: #{_forward.1} parent=11 // pred_region
          _
        $region20: #{_forward.1} parent=11 // pred_fallthru
          _
        // Predicated region
        $region21: #{_forward.1} parent=11 // pred_check
          %p295 = pneg %p135
        $region22: #{_forward.1} parent=11 // pred_check_branch
          %297 = sbr.rel (%p295) target = $region24
        $region23: #{_forward.1} parent=11 // pred_region
          _
        $region24: #{_forward.1} parent=11 // pred_fallthru
          _
        // Predicated region
        $region25: #{_forward.1} parent=11 // pred_check
          %p298 = pneg %p156
        $region26: #{_forward.1} parent=11 // pred_check_branch
          %300 = sbr.rel (%p298) target = $region28
        $region27: #{_forward.1} parent=11 // pred_region
          _
        $region28: #{_forward.1} parent=11 // pred_fallthru
          _
        // Predicated region
        $region29: #{_forward.1} parent=11 // pred_check
          %p301 = pneg %p177
        $region30: #{_forward.1} parent=11 // pred_check_branch
          %303 = sbr.rel (%p301) target = $region32
        $region31: #{_forward.1} parent=11 // pred_region
          _
        $region32: #{_forward.1} parent=11 // pred_fallthru
          _
        // Predicated region
        $region33: #{_forward.1} parent=11 // pred_check
          %p304 = pneg %p198
        $region34: #{_forward.1} parent=11 // pred_check_branch
          %306 = sbr.rel (%p304) target = $region36
        $region35: #{_forward.1} parent=11 // pred_region
          _
        $region36: #{_forward.1} parent=11 // pred_fallthru
          _
        // Predicated region
        $region37: #{_forward.1} parent=11 // pred_check
          %p307 = pneg %p219
        $region38: #{_forward.1} parent=11 // pred_check_branch
          %309 = sbr.rel (%p307) target = $region40
        $region39: #{_forward.1} parent=11 // pred_region
          _
        $region40: #{_forward.1} parent=11 // pred_fallthru
          _
        // Predicated region
        $region41: #{_forward.1} parent=11 // pred_check
          %p310 = pneg %p240
        $region42: #{_forward.1} parent=11 // pred_check_branch
          %312 = sbr.rel (%p310) target = $region44
        $region43: #{_forward.1} parent=11 // pred_region
          _
        $region44: #{_forward.1} parent=11 // pred_fallthru
          _
      $region12: #{_forward.1} parent=5 // pred_fallthru
        _
      %p313 = scmp.lt.s32.totalorder %s18, 2
      // Predicated region
      $region45: #{_forward.1} parent=5 // pred_check
        %p314 = pneg %p313
      $region46: #{_forward.1} parent=5 // pred_check_branch
        %316 = sbr.rel (%p314) target = $region48
      $region47: #{_forward.1} parent=5 // pred_region
        // Predicated region
        $region49: #{_forward.1} parent=47 // pred_check
          %p317 = pneg %p61
        $region50: #{_forward.1} parent=47 // pred_check_branch
          %319 = sbr.rel (%p317) target = $region52
        $region51: #{_forward.1} parent=47 // pred_region
          %s320 = smul.u32 2, %s26
          %p321 = scmp.lt.s32.totalorder %s25, 1
          %s322 = scalar_select %p321, %s25, 1
          %p323 = scmp.lt.s32.totalorder %s320, 1
          %s324 = scalar_select %p323, %s320, 1
          %p325 = scmp.lt.s32.totalorder %s27, 0
          %s326 = scalar_select %p325, %s27, 0
          %s327 = sadd.s32 %s326, %s324
          %s328 = smul.addr %s322, 2
          %s329 = sadd.s32 %s327, %s328
          %s330 = smul.addr %s329, 4
          %s331 = scalar_lea.vmem %s0, %s330
          %s332 = smul.u32 2, %s26
        $region52: #{_forward.1} parent=47 // pred_fallthru
          _
      $region48: #{_forward.1} parent=5 // pred_fallthru
        _
      %p333 = scmp.le.s32.totalorder 1, %s18
      %p334 = scmp.lt.s32.totalorder %s18, 3
      %p335 = pnand %p333, %p334
      %p336 = pneg %p335
      // Predicated region
      $region53: #{_forward.1} parent=5 // pred_check
        _
      $region54: #{_forward.1} parent=5 // pred_check_branch
        %338 = sbr.rel (%p335) target = $region56
      $region55: #{_forward.1} parent=5 // pred_region
        %s339 = ssub.s32 %s18, 1
        %s340 = smul.u32 2, %s29
        %p341 = scmp.lt.s32.totalorder %s28, 1
        %s342 = scalar_select %p341, %s28, 1
        %p343 = scmp.lt.s32.totalorder %s340, 1
        %s344 = scalar_select %p343, %s340, 1
        %p345 = scmp.lt.s32.totalorder %s30, 0
        %s346 = scalar_select %p345, %s30, 0
        %s347 = sadd.s32 %s346, %s344
        %s348 = smul.addr %s342, 2
        %s349 = sadd.s32 %s347, %s348
        %s350 = smul.addr %s349, 4
        %s351 = scalar_lea.vmem %s0, %s350
        %p352 = pneg %p67
        %p353 = pneg %p64
        %s354 = smul.u32 2, %s30
        %p355 = scmp.lt.s32.totalorder %s354, 1
        %s356 = scalar_select %p355, %s354, 1
        %s357 = smul.addr %s356, 4
        %s358 = scalar_lea.vmem %s1, %s357
        %p359 = pneg %p93
        %p360 = pneg %p90
        %p361 = pneg %p114
        %p362 = pneg %p111
        %p363 = pneg %p135
        %p364 = pneg %p132
        %p365 = pneg %p156
        %p366 = pneg %p153
        %p367 = pneg %p177
        %p368 = pneg %p174
        %p369 = pneg %p198
        %p370 = pneg %p195
        %p371 = pneg %p219
        %p372 = pneg %p216
        %p373 = pneg %p240
        %p374 = pneg %p237
        %p375 = pneg %p268
        %p376 = pneg %p265
        %s377 = sand.u32 %s255, 1
        %s378 = scalar_lea.sflag [#allocation4], %s377
        %s379 = sand.u32 %s255, 1
        %s380 = smul.addr %s379, 16
        %s381 = scalar_lea.vmem [#allocation3], %s380
        %s382 = smul.u32 2, %s29
        %p383 = scmp.lt.s32.totalorder %s28, 1
        %s384 = scalar_select %p383, %s28, 1
        %p385 = scmp.lt.s32.totalorder %s382, 1
        %s386 = scalar_select %p385, %s382, 1
        %p387 = scmp.lt.s32.totalorder %s30, 0
        %s388 = scalar_select %p387, %s30, 0
        %s389 = sadd.s32 %s388, %s386
        %s390 = smul.addr %s384, 2
        %s391 = sadd.s32 %s389, %s390
        %s392 = smul.addr %s391, 4
        %s393 = scalar_lea.vmem %s0, %s392
        %s394 = smul.u32 2, %s29
        %s395 = smul.u32 2, %s30
        %p396 = scmp.lt.s32.totalorder %s395, 1
        %s397 = scalar_select %p396, %s395, 1
        %s398 = smul.addr %s397, 4
        %s399 = scalar_lea.vmem %s1, %s398
        %s400 = smul.u32 2, %s30
        %s401 = smul.u32 2, %s29
        %v403 = vld [vmem:[%s393] sm:$0xf]
        %v404 = vld [vmem:[%s393 + $0x4] sm:$0xf]
        %v405 = vld [vmem:[%s399] sm:$0xf]
        %v406 = vld [vmem:[%s399 + $0x4] sm:$0xf]
        %v409 = vunpack.c.l.b16 %v403
        %v410 = vunpack.c.l.b16 %v404
        %v411 = vpack.c.b16 %v410, %v409
        %v414 = vunpack.c.l.b16 %v405
        %v415 = vunpack.c.l.b16 %v406
        %v416 = vpack.c.b16 %v415, %v414
        %vm418 = vcmask 130048
        %v420 = vsel %vm418, %v411, 0
        %422 = vmatprep.subr.bf16.mxu0 0
        %423 = vmatpush1.bf16.msra.mxu0 %v416
        %424 = vmatprep.subr.bf16.mxu0 0
        %425 = vmatpush1.bf16.msra.mxu0 0
        %426 = vmatprep.subr.bf16.mxu0 0
        %427 = vmatpush1.bf16.msra.mxu0 0
        %428 = vmatprep.subr.bf16.mxu0 0
        %429 = vmatpush1.bf16.msra.mxu0 0
        %430 = vmatprep.subr.bf16.mxu0 0
        %431 = vmatpush1.bf16.msra.mxu0 0
        %432 = vmatprep.subr.bf16.mxu0 0
        %433 = vmatpush1.bf16.msra.mxu0 0
        %434 = vmatprep.subr.bf16.mxu0 0
        %435 = vmatpush1.bf16.msra.mxu0 0
        %436 = vmatprep.subr.bf16.mxu0 0
        %437 = vmatpush1.bf16.msra.mxu0 0
        %438 = vmatprep.subr.bf16.mxu0 0
        %439 = vmatpush1.bf16.msra.mxu0 0
        %440 = vmatprep.subr.bf16.mxu0 0
        %441 = vmatpush1.bf16.msra.mxu0 0
        %442 = vmatprep.subr.bf16.mxu0 0
        %443 = vmatpush1.bf16.msra.mxu0 0
        %444 = vmatprep.subr.bf16.mxu0 0
        %445 = vmatpush1.bf16.msra.mxu0 0
        %446 = vmatprep.subr.bf16.mxu0 0
        %447 = vmatpush1.bf16.msra.mxu0 0
        %448 = vmatprep.subr.bf16.mxu0 0
        %449 = vmatpush1.bf16.msra.mxu0 0
        %450 = vmatprep.subr.bf16.mxu0 0
        %451 = vmatpush1.bf16.msra.mxu0 0
        %452 = vmatprep.subr.bf16.mxu0 0
        %453 = vmatpush1.bf16.msra.mxu0 0
        %454 = vmatprep.mubr.bf16.mxu0 0
        %455 = vmatmul.mubr.bf16.gmra.mrb[0].mxu0 %v420
        %v456 = vpop.f32.mrb[0].mxu0
        %v457 = vadd.f32 0.0, %v456
        %v458 = vpop.f32.mrb[0].mxu0
        %v459 = vpop.f32.mrb[0].mxu0
        %v460 = vadd.f32 0.0, %v459
        %v461 = vpop.f32.mrb[0].mxu0
        %462 = vdwg.mxu0
        %p463 = scmp.eq.s32.totalorder %s30, 0
        // Predicated region
        $region57: #{_forward.1} parent=55 // pred_check
          %p464 = pneg %p463
        $region58: #{_forward.1} parent=55 // pred_check_branch
          %466 = sbr.rel (%p464) target = $region60
        $region59: #{_forward.1} parent=55 // pred_region
          %467 = vst [vmem:[#allocation2] sm:$0xff] %v457
          %468 = vst [vmem:[#allocation2 + $0x8] sm:$0xff] %v460
        $region60: #{_forward.1} parent=55 // pred_fallthru
          _
        %p469 = scmp.ne.s32.totalorder %s30, 0
        // Predicated region
        $region61: #{_forward.1} parent=55 // pred_check
          %p470 = pneg %p469
        $region62: #{_forward.1} parent=55 // pred_check_branch
          %472 = sbr.rel (%p470) target = $region64
        $region63: #{_forward.1} parent=55 // pred_region
          %v473 = vld [vmem:[#allocation2] sm:$0xff]
          %v474 = vld [vmem:[#allocation2 + $0x8] sm:$0xff]
          %v475 = vadd.f32 %v473, %v457
          %v476 = vadd.f32 %v474, %v460
          %477 = vst [vmem:[#allocation2] sm:$0xff] %v475
          %478 = vst [vmem:[#allocation2 + $0x8] sm:$0xff] %v476
        $region64: #{_forward.1} parent=55 // pred_fallthru
          _
        // Predicated region
        $region65: #{_forward.1} parent=55 // pred_check
          %p479 = pneg %p463
        $region66: #{_forward.1} parent=55 // pred_check_branch
          %481 = sbr.rel (%p479) target = $region68
        $region67: #{_forward.1} parent=55 // pred_region
          %v482 = vld [vmem:[#allocation2] sm:$0xff]
          %v483 = vld [vmem:[#allocation2 + $0x8] sm:$0xff]
          %v484 = vld [vmem:[%s2] sm:$0xff]
          %v485 = vld [vmem:[%s2 + $0x8] sm:$0xff]
          %v486 = vld [vmem:[%s2 + $0x10] sm:$0xff]
          %v487 = vld [vmem:[%s2 + $0x18] sm:$0xff]
          %v488 = vld [vmem:[%s2 + $0x20] sm:$0xff]
          %v489 = vld [vmem:[%s2 + $0x28] sm:$0xff]
          %v490 = vld [vmem:[%s2 + $0x30] sm:$0xff]
          %v491 = vld [vmem:[%s2 + $0x38] sm:$0xff]
          %v492 = vld [vmem:[%s2 + $0x40] sm:$0xff]
          %v493 = vld [vmem:[%s2 + $0x48] sm:$0xff]
          %v494 = vld [vmem:[%s2 + $0x50] sm:$0xff]
          %v495 = vld [vmem:[%s2 + $0x58] sm:$0xff]
          %v496 = vld [vmem:[%s2 + $0x60] sm:$0xff]
          %v497 = vld [vmem:[%s2 + $0x68] sm:$0xff]
          %v498 = vld [vmem:[%s2 + $0x70] sm:$0xff]
          %v499 = vld [vmem:[%s2 + $0x78] sm:$0xff]
          %v500 = vld [vmem:[%s3] sm:$0x1]
          %v502 = vlaneseq
          %v503 = vshrl.u32 %v502, 7
          %v504 = vsub.s32 0, %v503
          %v505 = vrot.slane %v500, %v504
          %507 = vmatprep.subr.mxu0 0.0
          %508 = vmatpush1.msra.mxu0 %v484
          %509 = vmatprep.subr.mxu0 0.0
          %510 = vmatpush1.msra.mxu0 %v485
          %511 = vmatprep.subr.mxu0 0.0
          %512 = vmatpush1.msra.mxu0 %v486
          %513 = vmatprep.subr.mxu0 0.0
          %514 = vmatpush1.msra.mxu0 %v487
          %515 = vmatprep.subr.mxu0 0.0
          %516 = vmatpush1.msra.mxu0 %v488
          %517 = vmatprep.subr.mxu0 0.0
          %518 = vmatpush1.msra.mxu0 %v489
          %519 = vmatprep.subr.mxu0 0.0
          %520 = vmatpush1.msra.mxu0 %v490
          %521 = vmatprep.subr.mxu0 0.0
          %522 = vmatpush1.msra.mxu0 %v491
          %523 = vmatprep.subr.mxu0 0.0
          %524 = vmatpush1.msra.mxu0 %v492
          %525 = vmatprep.subr.mxu0 0.0
          %526 = vmatpush1.msra.mxu0 %v493
          %527 = vmatprep.subr.mxu0 0.0
          %528 = vmatpush1.msra.mxu0 %v494
          %529 = vmatprep.subr.mxu0 0.0
          %530 = vmatpush1.msra.mxu0 %v495
          %531 = vmatprep.subr.mxu0 0.0
          %532 = vmatpush1.msra.mxu0 %v496
          %533 = vmatprep.subr.mxu0 0.0
          %534 = vmatpush1.msra.mxu0 %v497
          %535 = vmatprep.subr.mxu0 0.0
          %536 = vmatpush1.msra.mxu0 %v498
          %537 = vmatprep.subr.mxu0 0.0
          %538 = vmatpush1.msra.mxu0 %v499
          %539 = vmatprep.subr.mxu0 0.0
          %540 = vmatpush1.msra.mxu0 0.0
          %541 = vmatprep.subr.mxu0 0.0
          %542 = vmatpush1.msra.mxu0 0.0
          %543 = vmatprep.subr.mxu0 0.0
          %544 = vmatpush1.msra.mxu0 0.0
          %545 = vmatprep.subr.mxu0 0.0
          %546 = vmatpush1.msra.mxu0 0.0
          %547 = vmatprep.subr.mxu0 0.0
          %548 = vmatpush1.msra.mxu0 0.0
          %549 = vmatprep.subr.mxu0 0.0
          %550 = vmatpush1.msra.mxu0 0.0
          %551 = vmatprep.subr.mxu0 0.0
          %552 = vmatpush1.msra.mxu0 0.0
          %553 = vmatprep.subr.mxu0 0.0
          %554 = vmatpush1.msra.mxu0 0.0
          %555 = vmatprep.subr.mxu0 0.0
          %556 = vmatpush1.msra.mxu0 0.0
          %557 = vmatprep.subr.mxu0 0.0
          %558 = vmatpush1.msra.mxu0 0.0
          %559 = vmatprep.subr.mxu0 0.0
          %560 = vmatpush1.msra.mxu0 0.0
          %561 = vmatprep.subr.mxu0 0.0
          %562 = vmatpush1.msra.mxu0 0.0
          %563 = vmatprep.subr.mxu0 0.0
          %564 = vmatpush1.msra.mxu0 0.0
          %565 = vmatprep.subr.mxu0 0.0
          %566 = vmatpush1.msra.mxu0 0.0
          %567 = vmatprep.subr.mxu0 0.0
          %568 = vmatpush1.msra.mxu0 0.0
          %569 = vmatprep.subr.mxu0 0.0
          %570 = vmatpush1.msra.mxu0 0.0
          %571 = vmatprep.mubr.f32.mxu0 0.0
          %572 = vmatmul.mubr.f32.gmra.mrb[0].mxu0 %v482
          %v573 = vpop.f32.mrb[0].mxu0
          %v574 = vadd.f32 %v505, %v573
          %v575 = vpop.f32.mrb[0].mxu0
          %576 = vmatprep.mubr.f32.mxu0 0.0
          %577 = vmatmul.mubr.f32.gmra.mrb[0].mxu0 %v483
          %v578 = vpop.f32.mrb[0].mxu0
          %v579 = vadd.f32 %v505, %v578
          %v580 = vpop.f32.mrb[0].mxu0
          %581 = vdwg.mxu0
          %582 = vadd.xlane.f32.xlu0 %v574
          %v583 = vpop.xlane.xlu0 %582
          %584 = vadd.xlane.f32.xlu0 %v579
          %v585 = vpop.xlane.xlu0 %584
          %v586 = vmul.f32 %v583, 0.03125
          %v587 = vmul.f32 %v585, 0.03125
          %v588 = vsub.f32 %v574, %v586
          %v589 = vsub.f32 %v579, %v587
          %v590 = vld [vmem:[%s6] sm:$0x1]
          %v592 = vlaneseq
          %v593 = vshrl.u32 %v592, 7
          %v594 = vsub.s32 0, %v593
          %v595 = vrot.slane %v590, %v594
          %v597 = vmul.f32 %v588, %v595
          %v598 = vmul.f32 %v589, %v595
          %v599 = vmul.f32 %v597, %v597
          %v600 = vmul.f32 %v598, %v598
          %601 = vadd.xlane.f32.xlu0 %v599
          %v602 = vpop.xlane.xlu0 %601
          %603 = vadd.xlane.f32.xlu0 %v600
          %v604 = vpop.xlane.xlu0 %603
          %v605 = vmul.f32 %v602, 0.03125
          %v606 = vmul.f32 %v604, 0.03125
          %v607 = vadd.f32 %v605, 1e-05
          %v608 = vadd.f32 %v606, 1e-05
          %v609 = vrsqrt.pop %v607
          %v610 = vrsqrt.pop %v608
          %v611 = vmul.f32 %v597, %v609
          %v612 = vmul.f32 %v598, %v610
          %v613 = vld [vmem:[%s4] sm:$0x1]
          %v615 = vlaneseq
          %v616 = vshrl.u32 %v615, 7
          %v617 = vsub.s32 0, %v616
          %v618 = vrot.slane %v613, %v617
          %v620 = vmul.f32 %v611, %v618
          %v621 = vmul.f32 %v612, %v618
          %v622 = vld [vmem:[%s5] sm:$0x1]
          %v624 = vlaneseq
          %v625 = vshrl.u32 %v624, 7
          %v626 = vsub.s32 0, %v625
          %v627 = vrot.slane %v622, %v626
          %v629 = vadd.f32 %v620, %v627
          %v630 = vadd.f32 %v621, %v627
          %v631 = vmul.f32 %v629, 0.5
          %v632 = vmul.f32 %v630, 0.5
          %v633 = vmul.f32 %v629, 0.70710677
          %v634 = vmul.f32 %v630, 0.70710677
          %v635 = verf.f32.pop %v633
          %v636 = verf.f32.pop %v634
          %v637 = vadd.f32 %v635, 1.0
          %v638 = vadd.f32 %v636, 1.0
          %v639 = vmul.f32 %v631, %v637
          %v640 = vmul.f32 %v632, %v638
          %v641 = vld [vmem:[%s7] sm:$0xff]
          %v642 = vld [vmem:[%s7 + $0x8] sm:$0xff]
          %v643 = vld [vmem:[%s7 + $0x10] sm:$0xff]
          %v644 = vld [vmem:[%s7 + $0x18] sm:$0xff]
          %v645 = vld [vmem:[%s7 + $0x20] sm:$0xff]
          %v646 = vld [vmem:[%s7 + $0x28] sm:$0xff]
          %v647 = vld [vmem:[%s7 + $0x30] sm:$0xff]
          %v648 = vld [vmem:[%s7 + $0x38] sm:$0xff]
          %v649 = vld [vmem:[%s7 + $0x40] sm:$0xff]
          %v650 = vld [vmem:[%s7 + $0x48] sm:$0xff]
          %v651 = vld [vmem:[%s7 + $0x50] sm:$0xff]
          %v652 = vld [vmem:[%s7 + $0x58] sm:$0xff]
          %v653 = vld [vmem:[%s7 + $0x60] sm:$0xff]
          %v654 = vld [vmem:[%s7 + $0x68] sm:$0xff]
          %v655 = vld [vmem:[%s7 + $0x70] sm:$0xff]
          %v656 = vld [vmem:[%s7 + $0x78] sm:$0xff]
          %v657 = vld [vmem:[%s8] sm:$0x1]
          %v659 = vlaneseq
          %v660 = vshrl.u32 %v659, 7
          %v661 = vsub.s32 0, %v660
          %v662 = vrot.slane %v657, %v661
          %664 = vmatprep.subr.mxu0 0.0
          %665 = vmatpush1.msra.mxu0 %v641
          %666 = vmatprep.subr.mxu0 0.0
          %667 = vmatpush1.msra.mxu0 %v642
          %668 = vmatprep.subr.mxu0 0.0
          %669 = vmatpush1.msra.mxu0 %v643
          %670 = vmatprep.subr.mxu0 0.0
          %671 = vmatpush1.msra.mxu0 %v644
          %672 = vmatprep.subr.mxu0 0.0
          %673 = vmatpush1.msra.mxu0 %v645
          %674 = vmatprep.subr.mxu0 0.0
          %675 = vmatpush1.msra.mxu0 %v646
          %676 = vmatprep.subr.mxu0 0.0
          %677 = vmatpush1.msra.mxu0 %v647
          %678 = vmatprep.subr.mxu0 0.0
          %679 = vmatpush1.msra.mxu0 %v648
          %680 = vmatprep.subr.mxu0 0.0
          %681 = vmatpush1.msra.mxu0 %v649
          %682 = vmatprep.subr.mxu0 0.0
          %683 = vmatpush1.msra.mxu0 %v650
          %684 = vmatprep.subr.mxu0 0.0
          %685 = vmatpush1.msra.mxu0 %v651
          %686 = vmatprep.subr.mxu0 0.0
          %687 = vmatpush1.msra.mxu0 %v652
          %688 = vmatprep.subr.mxu0 0.0
          %689 = vmatpush1.msra.mxu0 %v653
          %690 = vmatprep.subr.mxu0 0.0
          %691 = vmatpush1.msra.mxu0 %v654
          %692 = vmatprep.subr.mxu0 0.0
          %693 = vmatpush1.msra.mxu0 %v655
          %694 = vmatprep.subr.mxu0 0.0
          %695 = vmatpush1.msra.mxu0 %v656
          %696 = vmatprep.subr.mxu0 0.0
          %697 = vmatpush1.msra.mxu0 0.0
          %698 = vmatprep.subr.mxu0 0.0
          %699 = vmatpush1.msra.mxu0 0.0
          %700 = vmatprep.subr.mxu0 0.0
          %701 = vmatpush1.msra.mxu0 0.0
          %702 = vmatprep.subr.mxu0 0.0
          %703 = vmatpush1.msra.mxu0 0.0
          %704 = vmatprep.subr.mxu0 0.0
          %705 = vmatpush1.msra.mxu0 0.0
          %706 = vmatprep.subr.mxu0 0.0
          %707 = vmatpush1.msra.mxu0 0.0
          %708 = vmatprep.subr.mxu0 0.0
          %709 = vmatpush1.msra.mxu0 0.0
          %710 = vmatprep.subr.mxu0 0.0
          %711 = vmatpush1.msra.mxu0 0.0
          %712 = vmatprep.subr.mxu0 0.0
          %713 = vmatpush1.msra.mxu0 0.0
          %714 = vmatprep.subr.mxu0 0.0
          %715 = vmatpush1.msra.mxu0 0.0
          %716 = vmatprep.subr.mxu0 0.0
          %717 = vmatpush1.msra.mxu0 0.0
          %718 = vmatprep.subr.mxu0 0.0
          %719 = vmatpush1.msra.mxu0 0.0
          %720 = vmatprep.subr.mxu0 0.0
          %721 = vmatpush1.msra.mxu0 0.0
          %722 = vmatprep.subr.mxu0 0.0
          %723 = vmatpush1.msra.mxu0 0.0
          %724 = vmatprep.subr.mxu0 0.0
          %725 = vmatpush1.msra.mxu0 0.0
          %726 = vmatprep.subr.mxu0 0.0
          %727 = vmatpush1.msra.mxu0 0.0
          %728 = vmatprep.mubr.f32.mxu0 0.0
          %729 = vmatmul.mubr.f32.gmra.mrb[0].mxu0 %v639
          %v730 = vpop.f32.mrb[0].mxu0
          %v731 = vadd.f32 %v662, %v730
          %v732 = vpop.f32.mrb[0].mxu0
          %733 = vmatprep.mubr.f32.mxu0 0.0
          %734 = vmatmul.mubr.f32.gmra.mrb[0].mxu0 %v640
          %v735 = vpop.f32.mrb[0].mxu0
          %v736 = vadd.f32 %v662, %v735
          %v737 = vpop.f32.mrb[0].mxu0
          %738 = vdwg.mxu0
          %739 = vst [vmem:[%s381] sm:$0xff] %v731
          %740 = vst [vmem:[%s381 + $0x8] sm:$0xff] %v736
        $region68: #{_forward.1} parent=55 // pred_fallthru
          _
        %s741 = sand.u32 %s255, 1
        %s742 = scalar_lea.sflag [#allocation4], %s741
        %s743 = sand.u32 %s255, 1
        %s744 = smul.addr %s743, 16
        %s745 = scalar_lea.vmem [#allocation3], %s744
        // Predicated region
        $region69: #{_forward.1} parent=55 // pred_check
          %p746 = pneg %p265
        $region70: #{_forward.1} parent=55 // pred_check_branch
          %748 = sbr.rel (%p746) target = $region72
        $region71: #{_forward.1} parent=55 // pred_region
          %s749 = smul.u32 2, %s29
          %s751 = ssub.s32 256, 256
          %752 = vsyncadd %s742, %s751
          %s753 = smul.addr %s28, 2
          %s754 = sadd.s32 %s749, %s753
          %s755 = smul.addr %s754, 128
          %s756 = scalar_lea.hbm %s9, %s755
          %s757 = sshll.u32 %s745, 4
          %s758 = int_to_ptr.vmem [resolvable:$true] %s757
          %763 = dma.vmem_to_hbm [thread:$0]  %s758, 256, %s756, %s742, 128, 128, 8
        $region72: #{_forward.1} parent=55 // pred_fallthru
          _
      $region56: #{_forward.1} parent=5 // pred_fallthru
        _
      %p764 = scmp.le.s32.totalorder 2, %s18
      // Predicated region
      $region73: #{_forward.1} parent=5 // pred_check
        %p765 = pneg %p764
      $region74: #{_forward.1} parent=5 // pred_check_branch
        %767 = sbr.rel (%p765) target = $region76
      $region75: #{_forward.1} parent=5 // pred_region
        %s768 = ssub.s32 %s18, 2
        // Predicated region
        $region77: #{_forward.1} parent=75 // pred_check
          %p769 = pneg %p271
        $region78: #{_forward.1} parent=75 // pred_check_branch
          %771 = sbr.rel (%p769) target = $region80
        $region79: #{_forward.1} parent=75 // pred_region
          %s772 = sand.u32 %s256, 1
          %s773 = scalar_lea.sflag [#allocation4], %s772
          %s774 = sand.u32 %s256, 1
          %s775 = smul.addr %s774, 16
          %s776 = scalar_lea.vmem [#allocation3], %s775
          %777 = dma.done %s773, 256
        $region80: #{_forward.1} parent=75 // pred_fallthru
          _
      $region76: #{_forward.1} parent=5 // pred_fallthru
        _
    $region6: #{_forward.1} parent=1 // loop_footer
      %s22 = sadd.s32 1, %s18
    $region7: #{_forward.1} parent=1 // loop_footer_branch
      %17 = sbr.rel target = $region3
    $region8: #{_forward.1} parent=1 // loop_exit
      _
    %778 = vsyncpa [#allocation4], 1
    %s779 = scalar_lea.sflag [#allocation4], 1
    %780 = vsyncpa %s779, 1

</llo_original>
